<compile_context>
chip_gen: v6e
topology: v6e:2x2x1
jax: 0.10.0
libtpu: 0.0.40
codegen_flags: <defaults>
</compile_context>

<pallas_src>
import functools

import jax
import jax.numpy as jnp
from jax.experimental import pallas as pl
from jax.experimental.pallas import tpu as pltpu

LANE_PAD = 256   # K / N padding multiple (MXU + lane friendly)
SUBLANE = 8


def _round_up(v, m):
    return ((v + m - 1) // m) * m


def _pad2d(a, rows, cols):
    r, c = a.shape
    if r == rows and c == cols:
        return a
    return jnp.pad(a, ((0, rows - r), (0, cols - c)))


def _pick_tk(kpad):
    # kpad is always a multiple of 256, so this always returns a divisor.
    for cand in (2048, 1024, 512, 256):
        if cand <= kpad and kpad % cand == 0:
            return cand
    return kpad


def _pick_tn(npad):
    for cand in (512, 256):
        if cand <= npad and npad % cand == 0:
            return cand
    return npad


# ----------------------------------------------------------------------------
# Fused  (x @ Wt) * scale + shift -> leaky_relu(slope)   (fc1/fc2 + folded BN)
# Accumulates in an f32 VMEM scratch; writes bf16 activations in the epilogue.
# ----------------------------------------------------------------------------
def _matmul_affine_act_kernel(x_ref, wt_ref, scale_ref, shift_ref, o_ref,
                              acc_ref, *, slope):
    k = pl.program_id(2)

    @pl.when(k == 0)
    def _():
        acc_ref[...] = jnp.zeros_like(acc_ref)

    acc_ref[...] += jnp.dot(x_ref[...], wt_ref[...],
                            preferred_element_type=jnp.float32)

    @pl.when(k == pl.num_programs(2) - 1)
    def _():
        y = acc_ref[...] * scale_ref[...] + shift_ref[...]
        y = jnp.where(y >= 0, y, slope * y)          # leaky_relu(slope)
        o_ref[...] = y.astype(o_ref.dtype)


def linear_affine_act(x_bf16, wt_bf16, scale, shift, *, slope):
    """x: (Mpad, Kpad) bf16, wt: (Kpad, Npad) bf16, scale/shift: (1, Npad) f32.
    Returns bf16 (Mpad, Npad) = leaky_relu((x @ wt) * scale + shift, slope)."""
    M, K = x_bf16.shape
    Kw, N = wt_bf16.shape
    assert K == Kw and K % LANE_PAD == 0 and N % LANE_PAD == 0 and M % SUBLANE == 0

    tn = _pick_tn(N)
    tk = _pick_tk(K)
    tm = M if M <= 256 else 256
    assert M % tm == 0
    grid = (M // tm, N // tn, K // tk)   # reduction axis (k) last

    kernel = functools.partial(_matmul_affine_act_kernel, slope=slope)

    return pl.pallas_call(
        kernel,
        out_shape=jax.ShapeDtypeStruct((M, N), jnp.bfloat16),
        grid_spec=pltpu.PrefetchScalarGridSpec(
            num_scalar_prefetch=0,
            grid=grid,
            in_specs=[
                pl.BlockSpec((tm, tk), lambda m, n, k: (m, k)),   # x (bf16)
                pl.BlockSpec((tk, tn), lambda m, n, k: (k, n)),   # w_t (bf16)
                pl.BlockSpec((1, tn), lambda m, n, k: (0, n)),    # scale (f32)
                pl.BlockSpec((1, tn), lambda m, n, k: (0, n)),    # shift (f32)
            ],
            out_specs=pl.BlockSpec((tm, tn), lambda m, n, k: (m, n)),
            scratch_shapes=[pltpu.VMEM((tm, tn), jnp.float32)],
        ),
        compiler_params=pltpu.CompilerParams(
            dimension_semantics=("parallel", "parallel", "arbitrary"),
            vmem_limit_bytes=32 * 1024 * 1024),
    )(x_bf16, wt_bf16, scale, shift)


# ----------------------------------------------------------------------------
# Fused head:  leaky_relu(x @ W3t + b3, 0.2)  ->  relu(... @ W4t + b4)
# Output is a lane-padded (M, 128) f32 slab; column 0 is the real fc4 output.
# ----------------------------------------------------------------------------
def _head_kernel(x_ref, w3_ref, b3_ref, w4_ref, b4_ref, o_ref):
    y = jnp.dot(x_ref[...], w3_ref[...], preferred_element_type=jnp.float32)
    y = y + b3_ref[...]
    y = jnp.where(y >= 0, y, 0.2 * y)            # leaky_relu(0.2)  (fc3)
    z = jnp.dot(y.astype(w4_ref.dtype), w4_ref[...],
                preferred_element_type=jnp.float32)
    z = z + b4_ref[...]
    o_ref[...] = jnp.maximum(z, 0.0)             # relu             (fc4)


def head_fused(x_bf16, w3t, b3, w4t, b4):
    M, K = x_bf16.shape
    _, N3 = w3t.shape
    _, N4 = w4t.shape
    tm = M if M <= 256 else 256
    assert M % tm == 0
    return pl.pallas_call(
        _head_kernel,
        out_shape=jax.ShapeDtypeStruct((M, N4), jnp.float32),
        grid_spec=pltpu.PrefetchScalarGridSpec(
            num_scalar_prefetch=0,
            grid=(M // tm,),
            in_specs=[
                pl.BlockSpec((tm, K), lambda i: (i, 0)),
                pl.BlockSpec((K, N3), lambda i: (0, 0)),
                pl.BlockSpec((1, N3), lambda i: (0, 0)),
                pl.BlockSpec((N3, N4), lambda i: (0, 0)),
                pl.BlockSpec((1, N4), lambda i: (0, 0)),
            ],
            out_specs=pl.BlockSpec((tm, N4), lambda i: (i, 0)),
        ),
        compiler_params=pltpu.CompilerParams(
            dimension_semantics=("parallel",)),
    )(x_bf16, w3t, b3, w4t, b4)


# ----------------------------------------------------------------------------
# Parameter construction (deterministic, synthetic) + BN folding + padding
# ----------------------------------------------------------------------------
def make_linear(key, in_f, out_f):
    kw, kb = jax.random.split(key)
    bound = 1.0 / jnp.sqrt(in_f)
    w = jax.random.uniform(kw, (out_f, in_f), jnp.float32, -bound, bound)
    b = jax.random.uniform(kb, (out_f,), jnp.float32, -bound, bound)
    return w, b


def make_bn(key, num_features):
    kg, kb, km, kv = jax.random.split(key, 4)
    gamma = jax.random.uniform(kg, (num_features,), jnp.float32, 0.8, 1.2)
    beta = jax.random.uniform(kb, (num_features,), jnp.float32, -0.1, 0.1)
    running_mean = jax.random.uniform(km, (num_features,), jnp.float32, -0.5, 0.5)
    running_var = jax.random.uniform(kv, (num_features,), jnp.float32, 0.5, 1.5)
    return gamma, beta, running_mean, running_var


def fold_bn(bias, gamma, beta, mean, var, eps=1e-5):
    inv_std = gamma / jnp.sqrt(var + eps)
    scale = inv_std
    shift = (bias - mean) * inv_std + beta
    return scale[None, :], shift[None, :]


def build_params(key, in_features, h1, h2, h3):
    keys = jax.random.split(key, 6)
    fc1_w, fc1_b = make_linear(keys[0], in_features, h1)
    fc2_w, fc2_b = make_linear(keys[1], h1, h2)
    fc3_w, fc3_b = make_linear(keys[2], h2, h3)
    fc4_w, fc4_b = make_linear(keys[3], h3, 1)
    bn1 = make_bn(keys[4], h1)
    bn2 = make_bn(keys[5], h2)

    s1, sh1 = fold_bn(fc1_b, *bn1)
    s2, sh2 = fold_bn(fc2_b, *bn2)

    k1p = _round_up(in_features, LANE_PAD)
    n1p = _round_up(h1, LANE_PAD)
    n2p = _round_up(h2, LANE_PAD)
    n3p = _round_up(h3, 128)
    n4p = 128   # lane-padded slab for the N=1 fc4 output

    return dict(
        # weights streamed in bf16; zero-padded so padded lanes contribute 0
        w1t=_pad2d(fc1_w.T, k1p, n1p).astype(jnp.bfloat16),
        s1=_pad2d(s1, 1, n1p), sh1=_pad2d(sh1, 1, n1p),
        w2t=_pad2d(fc2_w.T, n1p, n2p).astype(jnp.bfloat16),
        s2=_pad2d(s2, 1, n2p), sh2=_pad2d(sh2, 1, n2p),
        w3t=_pad2d(fc3_w.T, n2p, n3p).astype(jnp.bfloat16),
        b3=_pad2d(fc3_b[None, :], 1, n3p),
        w4t=_pad2d(fc4_w.T, n3p, n4p).astype(jnp.bfloat16),
        b4=_pad2d(fc4_b[None, :], 1, n4p),
    )


def _prep_input(x_nchw, kpad):
    """Flatten NCHW -> (B, C*H*W), zero-pad to (Mpad, Kpad), cast to bf16."""
    b = x_nchw.shape[0]
    x = x_nchw.reshape(b, -1).astype(jnp.float32)
    mpad = _round_up(b, SUBLANE)
    if mpad > 256:
        mpad = _round_up(b, 256)
    xp = jnp.zeros((mpad, kpad), jnp.float32).at[:b, :x.shape[1]].set(x)
    return xp.astype(jnp.bfloat16)


# ----------------------------------------------------------------------------
# energyRegressor forward (eval mode: dropout == identity, BN uses running
# stats; bn3 exists in the module but is not applied in forward)
# ----------------------------------------------------------------------------
def energy_regressor_forward(x_nchw, params):
    b = x_nchw.shape[0]
    xb = _prep_input(x_nchw, params["w1t"].shape[0])

    h = linear_affine_act(xb, params["w1t"], params["s1"], params["sh1"],
                          slope=0.2)                       # fc1 + bn1 + lrelu
    # drp1: dropout(p=0.2) — identity in eval mode
    h = linear_affine_act(h, params["w2t"], params["s2"], params["sh2"],
                          slope=0.2)                       # fc2 + bn2 + lrelu
    # drp2: dropout(p=0.1) — identity in eval mode
    out = head_fused(h, params["w3t"], params["b3"],
                     params["w4t"], params["b4"])          # fc3+lrelu, fc4+relu
    return out[:b, :1]


if __name__ == "__main__":
    # Small, forward-consistent shapes (real module: 48*25*25 -> 5000 -> 1000 -> 100 -> 1)
    B, C, H, W = 2, 4, 16, 16
    in_features = C * H * W          # 1024
    h1, h2, h3 = 512, 256, 100

    key = jax.random.PRNGKey(0)
    k_x, k_p = jax.random.split(key)

    x = jax.random.normal(k_x, (B, C, H, W), jnp.float32)   # NCHW like PyTorch
    params = build_params(k_p, in_features, h1, h2, h3)

    fwd = jax.jit(energy_regressor_forward)
    out = fwd(x, params)
    jax.block_until_ready(out)

    # sanity: (B, 1) non-negative output (final ReLU)
    assert out.shape == (B, 1)
    assert bool(jnp.all(out >= 0))

    # pure-JAX reference using the exact same (padded, bf16) parameters and
    # the same bf16 activation casts, so it matches the kernel computation.
    def ref_forward(x_nchw, params):
        b = x_nchw.shape[0]
        xb = _prep_input(x_nchw, params["w1t"].shape[0])

        def lrelu(v, s):
            return jnp.where(v >= 0, v, s * v)

        def bdot(a, w):
            return jnp.dot(a, w, preferred_element_type=jnp.float32)

        hh = lrelu(bdot(xb, params["w1t"]) * params["s1"] + params["sh1"], 0.2)
        hh = hh.astype(jnp.bfloat16)
        hh = lrelu(bdot(hh, params["w2t"]) * params["s2"] + params["sh2"], 0.2)
        hh = hh.astype(jnp.bfloat16)
        yy = lrelu(bdot(hh, params["w3t"]) + params["b3"], 0.2)
        zz = jnp.maximum(bdot(yy.astype(jnp.bfloat16), params["w4t"])
                         + params["b4"], 0.0)
        return zz[:b, :1]

    ref = ref_forward(x, params)
    assert jnp.allclose(out, ref, atol=1e-3, rtol=1e-3), (out, ref)

    print("KERNEL_OK")
</pallas_src>

<mosaic_0001>
module attributes {stable_mosaic.version = 11 : i64} {
  func.func @_matmul_affine_act_kernel(%arg0: i32, %arg1: i32, %arg2: i32, %arg3: memref<8x512xbf16, #tpu.memory_space<vmem>>, %arg4: memref<512x256xbf16, #tpu.memory_space<vmem>>, %arg5: memref<1x256xf32, #tpu.memory_space<vmem>>, %arg6: memref<1x256xf32, #tpu.memory_space<vmem>>, %arg7: memref<8x256xbf16, #tpu.memory_space<vmem>>, %arg8: memref<8x256xf32, #tpu.memory_space<vmem>>) attributes {dimension_semantics = [#tpu.dimension_semantics<parallel>, #tpu.dimension_semantics<parallel>, #tpu.dimension_semantics<arbitrary>], iteration_bounds = array<i64: 1, 1, 1>, scalar_prefetch = 0 : i64, scratch_operands = 1 : i64, tpu.core_type = #tpu.core_type<tc>, window_params = [{transform_indices = @transform_0, window_bounds = array<i64: 8, 512>}, {transform_indices = @transform_1, window_bounds = array<i64: 512, 256>}, {transform_indices = @transform_2, window_bounds = array<i64: 1, 256>}, {transform_indices = @transform_3, window_bounds = array<i64: 1, 256>}, {transform_indices = @transform_4, window_bounds = array<i64: 8, 256>}]} {
    %c0_i32 = arith.constant 0 : i32
    %0 = arith.cmpi eq, %arg2, %c0_i32 : i32
    %1 = arith.extui %0 : i1 to i32
    %c0_i32_0 = arith.constant 0 : i32
    %2 = arith.cmpi ne, %1, %c0_i32_0 : i32
    scf.if %2 {
      %cst_10 = arith.constant 0.000000e+00 : f32
      %12 = vector.broadcast %cst_10 : f32 to vector<8x256xf32>
      %c0_11 = arith.constant 0 : index
      %c0_12 = arith.constant 0 : index
      %13 = vector.load %arg8[%c0_11, %c0_12] : memref<8x256xf32, #tpu.memory_space<vmem>>, vector<8x256xf32>
      tpu.vector_store %arg8[%c0_11, %c0_12], %12 {strides = array<i32>} : memref<8x256xf32, #tpu.memory_space<vmem>>, vector<8x256xf32>,
    } else {
    }
    %c0 = arith.constant 0 : index
    %c0_1 = arith.constant 0 : index
    %3 = vector.load %arg8[%c0, %c0_1] : memref<8x256xf32, #tpu.memory_space<vmem>>, vector<8x256xf32>
    %c0_2 = arith.constant 0 : index
    %c0_3 = arith.constant 0 : index
    %4 = vector.load %arg3[%c0_2, %c0_3] : memref<8x512xbf16, #tpu.memory_space<vmem>>, vector<8x512xbf16>
    %c0_4 = arith.constant 0 : index
    %c0_5 = arith.constant 0 : index
    %5 = vector.load %arg4[%c0_4, %c0_5] : memref<512x256xbf16, #tpu.memory_space<vmem>>, vector<512x256xbf16>
    %cst = arith.constant dense<0.000000e+00> : vector<8x256xf32>
    %6 = tpu.matmul %4, %5, %cst {dimension_numbers = #tpu.dot_dimension_numbers<[1], [0], [0], [1], [0, 0, 1, 1], [], []>} : vector<8x512xbf16>, vector<512x256xbf16>, vector<8x256xf32> -> vector<8x256xf32>
    %7 = arith.addf %3, %6 : vector<8x256xf32>
    %c0_6 = arith.constant 0 : index
    %c0_7 = arith.constant 0 : index
    %8 = vector.load %arg8[%c0_6, %c0_7] : memref<8x256xf32, #tpu.memory_space<vmem>>, vector<8x256xf32>
    tpu.vector_store %arg8[%c0_6, %c0_7], %7 {strides = array<i32>} : memref<8x256xf32, #tpu.memory_space<vmem>>, vector<8x256xf32>,
    %c0_i32_8 = arith.constant 0 : i32
    %9 = arith.cmpi eq, %arg2, %c0_i32_8 : i32
    %10 = arith.extui %9 : i1 to i32
    %c0_i32_9 = arith.constant 0 : i32
    %11 = arith.cmpi ne, %10, %c0_i32_9 : i32
    scf.if %11 {
      %c0_10 = arith.constant 0 : index
      %c0_11 = arith.constant 0 : index
      %12 = vector.load %arg8[%c0_10, %c0_11] : memref<8x256xf32, #tpu.memory_space<vmem>>, vector<8x256xf32>
      %c0_12 = arith.constant 0 : index
      %c0_13 = arith.constant 0 : index
      %13 = vector.load %arg5[%c0_12, %c0_13] : memref<1x256xf32, #tpu.memory_space<vmem>>, vector<1x256xf32>
      %14 = vector.broadcast %13 : vector<1x256xf32> to vector<8x256xf32>
      %15 = arith.mulf %12, %14 : vector<8x256xf32>
      %c0_14 = arith.constant 0 : index
      %c0_15 = arith.constant 0 : index
      %16 = vector.load %arg6[%c0_14, %c0_15] : memref<1x256xf32, #tpu.memory_space<vmem>>, vector<1x256xf32>
      %17 = vector.broadcast %16 : vector<1x256xf32> to vector<8x256xf32>
      %18 = arith.addf %15, %17 : vector<8x256xf32>
      %cst_16 = arith.constant 0.000000e+00 : f32
      %19 = vector.broadcast %cst_16 : f32 to vector<8x256xf32>
      %20 = arith.cmpf oge, %18, %19 : vector<8x256xf32>
      %cst_17 = arith.constant 2.000000e-01 : f32
      %21 = vector.broadcast %cst_17 : f32 to vector<8x256xf32>
      %22 = arith.mulf %21, %18 : vector<8x256xf32>
      %23 = arith.select %20, %18, %22 : vector<8x256xi1>, vector<8x256xf32>
      %24 = arith.truncf %23 : vector<8x256xf32> to vector<8x256xbf16>
      %c0_18 = arith.constant 0 : index
      %c0_19 = arith.constant 0 : index
      %25 = vector.load %arg7[%c0_18, %c0_19] : memref<8x256xbf16, #tpu.memory_space<vmem>>, vector<8x256xbf16>
      tpu.vector_store %arg7[%c0_18, %c0_19], %24 {strides = array<i32>} : memref<8x256xbf16, #tpu.memory_space<vmem>>, vector<8x256xbf16>,
    } else {
    }
    return
  }
  func.func @transform_0(%arg0: i32, %arg1: i32, %arg2: i32) -> (i32, i32) {
    %c0_i32 = arith.constant 0 : i32
    return %arg0, %arg2 : i32, i32
  }
  func.func @transform_1(%arg0: i32, %arg1: i32, %arg2: i32) -> (i32, i32) {
    %c0_i32 = arith.constant 0 : i32
    return %arg2, %arg1 : i32, i32
  }
  func.func @transform_2(%arg0: i32, %arg1: i32, %arg2: i32) -> (i32, i32) {
    %c0_i32 = arith.constant 0 : i32
    %c0_i32_0 = arith.constant 0 : i32
    return %c0_i32, %arg1 : i32, i32
  }
  func.func @transform_3(%arg0: i32, %arg1: i32, %arg2: i32) -> (i32, i32) {
    %c0_i32 = arith.constant 0 : i32
    %c0_i32_0 = arith.constant 0 : i32
    return %c0_i32, %arg1 : i32, i32
  }
  func.func @transform_4(%arg0: i32, %arg1: i32, %arg2: i32) -> (i32, i32) {
    %c0_i32 = arith.constant 0 : i32
    return %arg0, %arg1 : i32, i32
  }
}

module attributes {stable_mosaic.version = 11 : i64} {
  func.func @_matmul_affine_act_kernel(%arg0: i32, %arg1: i32, %arg2: i32, %arg3: memref<8x1024xbf16, #tpu.memory_space<vmem>>, %arg4: memref<1024x512xbf16, #tpu.memory_space<vmem>>, %arg5: memref<1x512xf32, #tpu.memory_space<vmem>>, %arg6: memref<1x512xf32, #tpu.memory_space<vmem>>, %arg7: memref<8x512xbf16, #tpu.memory_space<vmem>>, %arg8: memref<8x512xf32, #tpu.memory_space<vmem>>) attributes {dimension_semantics = [#tpu.dimension_semantics<parallel>, #tpu.dimension_semantics<parallel>, #tpu.dimension_semantics<arbitrary>], iteration_bounds = array<i64: 1, 1, 1>, scalar_prefetch = 0 : i64, scratch_operands = 1 : i64, tpu.core_type = #tpu.core_type<tc>, window_params = [{transform_indices = @transform_0, window_bounds = array<i64: 8, 1024>}, {transform_indices = @transform_1, window_bounds = array<i64: 1024, 512>}, {transform_indices = @transform_2, window_bounds = array<i64: 1, 512>}, {transform_indices = @transform_3, window_bounds = array<i64: 1, 512>}, {transform_indices = @transform_4, window_bounds = array<i64: 8, 512>}]} {
    %c0_i32 = arith.constant 0 : i32
    %0 = arith.cmpi eq, %arg2, %c0_i32 : i32
    %1 = arith.extui %0 : i1 to i32
    %c0_i32_0 = arith.constant 0 : i32
    %2 = arith.cmpi ne, %1, %c0_i32_0 : i32
    scf.if %2 {
      %cst_10 = arith.constant 0.000000e+00 : f32
      %12 = vector.broadcast %cst_10 : f32 to vector<8x512xf32>
      %c0_11 = arith.constant 0 : index
      %c0_12 = arith.constant 0 : index
      %13 = vector.load %arg8[%c0_11, %c0_12] : memref<8x512xf32, #tpu.memory_space<vmem>>, vector<8x512xf32>
      tpu.vector_store %arg8[%c0_11, %c0_12], %12 {strides = array<i32>} : memref<8x512xf32, #tpu.memory_space<vmem>>, vector<8x512xf32>,
    } else {
    }
    %c0 = arith.constant 0 : index
    %c0_1 = arith.constant 0 : index
    %3 = vector.load %arg8[%c0, %c0_1] : memref<8x512xf32, #tpu.memory_space<vmem>>, vector<8x512xf32>
    %c0_2 = arith.constant 0 : index
    %c0_3 = arith.constant 0 : index
    %4 = vector.load %arg3[%c0_2, %c0_3] : memref<8x1024xbf16, #tpu.memory_space<vmem>>, vector<8x1024xbf16>
    %c0_4 = arith.constant 0 : index
    %c0_5 = arith.constant 0 : index
    %5 = vector.load %arg4[%c0_4, %c0_5] : memref<1024x512xbf16, #tpu.memory_space<vmem>>, vector<1024x512xbf16>
    %cst = arith.constant dense<0.000000e+00> : vector<8x512xf32>
    %6 = tpu.matmul %4, %5, %cst {dimension_numbers = #tpu.dot_dimension_numbers<[1], [0], [0], [1], [0, 0, 1, 1], [], []>} : vector<8x1024xbf16>, vector<1024x512xbf16>, vector<8x512xf32> -> vector<8x512xf32>
    %7 = arith.addf %3, %6 : vector<8x512xf32>
    %c0_6 = arith.constant 0 : index
    %c0_7 = arith.constant 0 : index
    %8 = vector.load %arg8[%c0_6, %c0_7] : memref<8x512xf32, #tpu.memory_space<vmem>>, vector<8x512xf32>
    tpu.vector_store %arg8[%c0_6, %c0_7], %7 {strides = array<i32>} : memref<8x512xf32, #tpu.memory_space<vmem>>, vector<8x512xf32>,
    %c0_i32_8 = arith.constant 0 : i32
    %9 = arith.cmpi eq, %arg2, %c0_i32_8 : i32
    %10 = arith.extui %9 : i1 to i32
    %c0_i32_9 = arith.constant 0 : i32
    %11 = arith.cmpi ne, %10, %c0_i32_9 : i32
    scf.if %11 {
      %c0_10 = arith.constant 0 : index
      %c0_11 = arith.constant 0 : index
      %12 = vector.load %arg8[%c0_10, %c0_11] : memref<8x512xf32, #tpu.memory_space<vmem>>, vector<8x512xf32>
      %c0_12 = arith.constant 0 : index
      %c0_13 = arith.constant 0 : index
      %13 = vector.load %arg5[%c0_12, %c0_13] : memref<1x512xf32, #tpu.memory_space<vmem>>, vector<1x512xf32>
      %14 = vector.broadcast %13 : vector<1x512xf32> to vector<8x512xf32>
      %15 = arith.mulf %12, %14 : vector<8x512xf32>
      %c0_14 = arith.constant 0 : index
      %c0_15 = arith.constant 0 : index
      %16 = vector.load %arg6[%c0_14, %c0_15] : memref<1x512xf32, #tpu.memory_space<vmem>>, vector<1x512xf32>
      %17 = vector.broadcast %16 : vector<1x512xf32> to vector<8x512xf32>
      %18 = arith.addf %15, %17 : vector<8x512xf32>
      %cst_16 = arith.constant 0.000000e+00 : f32
      %19 = vector.broadcast %cst_16 : f32 to vector<8x512xf32>
      %20 = arith.cmpf oge, %18, %19 : vector<8x512xf32>
      %cst_17 = arith.constant 2.000000e-01 : f32
      %21 = vector.broadcast %cst_17 : f32 to vector<8x512xf32>
      %22 = arith.mulf %21, %18 : vector<8x512xf32>
      %23 = arith.select %20, %18, %22 : vector<8x512xi1>, vector<8x512xf32>
      %24 = arith.truncf %23 : vector<8x512xf32> to vector<8x512xbf16>
      %c0_18 = arith.constant 0 : index
      %c0_19 = arith.constant 0 : index
      %25 = vector.load %arg7[%c0_18, %c0_19] : memref<8x512xbf16, #tpu.memory_space<vmem>>, vector<8x512xbf16>
      tpu.vector_store %arg7[%c0_18, %c0_19], %24 {strides = array<i32>} : memref<8x512xbf16, #tpu.memory_space<vmem>>, vector<8x512xbf16>,
    } else {
    }
    return
  }
  func.func @transform_0(%arg0: i32, %arg1: i32, %arg2: i32) -> (i32, i32) {
    %c0_i32 = arith.constant 0 : i32
    return %arg0, %arg2 : i32, i32
  }
  func.func @transform_1(%arg0: i32, %arg1: i32, %arg2: i32) -> (i32, i32) {
    %c0_i32 = arith.constant 0 : i32
    return %arg2, %arg1 : i32, i32
  }
  func.func @transform_2(%arg0: i32, %arg1: i32, %arg2: i32) -> (i32, i32) {
    %c0_i32 = arith.constant 0 : i32
    %c0_i32_0 = arith.constant 0 : i32
    return %c0_i32, %arg1 : i32, i32
  }
  func.func @transform_3(%arg0: i32, %arg1: i32, %arg2: i32) -> (i32, i32) {
    %c0_i32 = arith.constant 0 : i32
    %c0_i32_0 = arith.constant 0 : i32
    return %c0_i32, %arg1 : i32, i32
  }
  func.func @transform_4(%arg0: i32, %arg1: i32, %arg2: i32) -> (i32, i32) {
    %c0_i32 = arith.constant 0 : i32
    return %arg0, %arg1 : i32, i32
  }
}

module attributes {stable_mosaic.version = 11 : i64} {
  func.func @_head_kernel(%arg0: i32, %arg1: memref<8x256xbf16, #tpu.memory_space<vmem>>, %arg2: memref<256x128xbf16, #tpu.memory_space<vmem>>, %arg3: memref<1x128xf32, #tpu.memory_space<vmem>>, %arg4: memref<128x128xbf16, #tpu.memory_space<vmem>>, %arg5: memref<1x128xf32, #tpu.memory_space<vmem>>, %arg6: memref<8x128xf32, #tpu.memory_space<vmem>>) attributes {dimension_semantics = [#tpu.dimension_semantics<parallel>], iteration_bounds = array<i64: 1>, scalar_prefetch = 0 : i64, scratch_operands = 0 : i64, tpu.core_type = #tpu.core_type<tc>, window_params = [{transform_indices = @transform_0, window_bounds = array<i64: 8, 256>}, {pipeline_mode = #tpu.pipeline_mode<synchronous>, transform_indices = @transform_1, window_bounds = array<i64: 256, 128>}, {pipeline_mode = #tpu.pipeline_mode<synchronous>, transform_indices = @transform_2, window_bounds = array<i64: 1, 128>}, {pipeline_mode = #tpu.pipeline_mode<synchronous>, transform_indices = @transform_3, window_bounds = array<i64: 128, 128>}, {pipeline_mode = #tpu.pipeline_mode<synchronous>, transform_indices = @transform_4, window_bounds = array<i64: 1, 128>}, {transform_indices = @transform_5, window_bounds = array<i64: 8, 128>}]} {
    %c0 = arith.constant 0 : index
    %c0_0 = arith.constant 0 : index
    %0 = vector.load %arg1[%c0, %c0_0] : memref<8x256xbf16, #tpu.memory_space<vmem>>, vector<8x256xbf16>
    %c0_1 = arith.constant 0 : index
    %c0_2 = arith.constant 0 : index
    %1 = vector.load %arg2[%c0_1, %c0_2] : memref<256x128xbf16, #tpu.memory_space<vmem>>, vector<256x128xbf16>
    %cst = arith.constant dense<0.000000e+00> : vector<8x128xf32>
    %2 = tpu.matmul %0, %1, %cst {dimension_numbers = #tpu.dot_dimension_numbers<[1], [0], [0], [1], [0, 0, 1, 1], [], []>} : vector<8x256xbf16>, vector<256x128xbf16>, vector<8x128xf32> -> vector<8x128xf32>
    %c0_3 = arith.constant 0 : index
    %c0_4 = arith.constant 0 : index
    %3 = vector.load %arg3[%c0_3, %c0_4] : memref<1x128xf32, #tpu.memory_space<vmem>>, vector<1x128xf32>
    %4 = vector.broadcast %3 : vector<1x128xf32> to vector<8x128xf32>
    %5 = arith.addf %2, %4 : vector<8x128xf32>
    %cst_5 = arith.constant 0.000000e+00 : f32
    %6 = vector.broadcast %cst_5 : f32 to vector<8x128xf32>
    %7 = arith.cmpf oge, %5, %6 : vector<8x128xf32>
    %cst_6 = arith.constant 2.000000e-01 : f32
    %8 = vector.broadcast %cst_6 : f32 to vector<8x128xf32>
    %9 = arith.mulf %8, %5 : vector<8x128xf32>
    %10 = arith.select %7, %5, %9 : vector<8x128xi1>, vector<8x128xf32>
    %11 = arith.truncf %10 : vector<8x128xf32> to vector<8x128xbf16>
    %c0_7 = arith.constant 0 : index
    %c0_8 = arith.constant 0 : index
    %12 = vector.load %arg4[%c0_7, %c0_8] : memref<128x128xbf16, #tpu.memory_space<vmem>>, vector<128x128xbf16>
    %cst_9 = arith.constant dense<0.000000e+00> : vector<8x128xf32>
    %13 = tpu.matmul %11, %12, %cst_9 {dimension_numbers = #tpu.dot_dimension_numbers<[1], [0], [0], [1], [0, 0, 1, 1], [], []>} : vector<8x128xbf16>, vector<128x128xbf16>, vector<8x128xf32> -> vector<8x128xf32>
    %c0_10 = arith.constant 0 : index
    %c0_11 = arith.constant 0 : index
    %14 = vector.load %arg5[%c0_10, %c0_11] : memref<1x128xf32, #tpu.memory_space<vmem>>, vector<1x128xf32>
    %15 = vector.broadcast %14 : vector<1x128xf32> to vector<8x128xf32>
    %16 = arith.addf %13, %15 : vector<8x128xf32>
    %cst_12 = arith.constant 0.000000e+00 : f32
    %17 = vector.broadcast %cst_12 : f32 to vector<8x128xf32>
    %18 = arith.maximumf %16, %17 : vector<8x128xf32>
    %c0_13 = arith.constant 0 : index
    %c0_14 = arith.constant 0 : index
    %19 = vector.load %arg6[%c0_13, %c0_14] : memref<8x128xf32, #tpu.memory_space<vmem>>, vector<8x128xf32>
    tpu.vector_store %arg6[%c0_13, %c0_14], %18 {strides = array<i32>} : memref<8x128xf32, #tpu.memory_space<vmem>>, vector<8x128xf32>,
    return
  }
  func.func @transform_0(%arg0: i32) -> (i32, i32) {
    %c0_i32 = arith.constant 0 : i32
    %c0_i32_0 = arith.constant 0 : i32
    return %arg0, %c0_i32 : i32, i32
  }
  func.func @transform_1(%arg0: i32) -> (i32, i32) {
    %c0_i32 = arith.constant 0 : i32
    %c0_i32_0 = arith.constant 0 : i32
    %c0_i32_1 = arith.constant 0 : i32
    return %c0_i32, %c0_i32_0 : i32, i32
  }
  func.func @transform_2(%arg0: i32) -> (i32, i32) {
    %c0_i32 = arith.constant 0 : i32
    %c0_i32_0 = arith.constant 0 : i32
    %c0_i32_1 = arith.constant 0 : i32
    return %c0_i32, %c0_i32_0 : i32, i32
  }
  func.func @transform_3(%arg0: i32) -> (i32, i32) {
    %c0_i32 = arith.constant 0 : i32
    %c0_i32_0 = arith.constant 0 : i32
    %c0_i32_1 = arith.constant 0 : i32
    return %c0_i32, %c0_i32_0 : i32, i32
  }
  func.func @transform_4(%arg0: i32) -> (i32, i32) {
    %c0_i32 = arith.constant 0 : i32
    %c0_i32_0 = arith.constant 0 : i32
    %c0_i32_1 = arith.constant 0 : i32
    return %c0_i32, %c0_i32_0 : i32, i32
  }
  func.func @transform_5(%arg0: i32) -> (i32, i32) {
    %c0_i32 = arith.constant 0 : i32
    %c0_i32_0 = arith.constant 0 : i32
    return %arg0, %c0_i32 : i32, i32
  }
}

</mosaic_0001>

<llo_original>
// kernel: energy_regressor_forward.5
$region0: #{energy_regressor_forward.5}
  #allocation0 [shape = 'u32[]', space=smem, size = 0x4, offset = 0x4, fixed_abs, tag = 'smem constant byte address 0x4 - core index']
  #allocation1 [shape = 'u32[144,128]{1,0:T(1,128)}', space=vmem, size = 0x12000, scoped, tag = 'internal scratch']
  %s0 = inlined_call_operand.vmem [shape: bf16[8,256], index: 0, kind: input, shape index: {}]
  %s1 = inlined_call_operand.vmem [shape: bf16[256,128], index: 1, kind: input, shape index: {}]
  %s2 = inlined_call_operand.vmem [shape: f32[1,128], index: 2, kind: input, shape index: {}]
  %s3 = inlined_call_operand.vmem [shape: bf16[128,128], index: 3, kind: input, shape index: {}]
  %s4 = inlined_call_operand.vmem [shape: f32[1,128], index: 4, kind: input, shape index: {}]
  %s5 = inlined_call_operand.vmem [shape: f32[8,128], index: 5, kind: output, shape index: {}]
  %s6 = sld [smem:[#allocation0]]
  $region30: #{energy_regressor_forward.5} parent=0
    _
  %s8 = ssub.s32 1, %s6
  %s9 = scalar_select 0, %s8, %s6
  // Predicated region
  $region2: #{energy_regressor_forward.5} parent=0 // pred_check
    _
  $region3: #{energy_regressor_forward.5} parent=0 // pred_check_branch
    %11 = sbr.rel (0) target = $region5
  $region4: #{energy_regressor_forward.5} parent=0 // pred_region
    _
  $region5: #{energy_regressor_forward.5} parent=0 // pred_fallthru
    _
  // Predicated region
  $region6: #{energy_regressor_forward.5} parent=0 // pred_check
    _
  $region7: #{energy_regressor_forward.5} parent=0 // pred_check_branch
    %13 = sbr.rel (0) target = $region9
  $region8: #{energy_regressor_forward.5} parent=0 // pred_region
    _
  $region9: #{energy_regressor_forward.5} parent=0 // pred_fallthru
    _
  // Predicated region
  $region10: #{energy_regressor_forward.5} parent=0 // pred_check
    _
  $region11: #{energy_regressor_forward.5} parent=0 // pred_check_branch
    %15 = sbr.rel (0) target = $region13
  $region12: #{energy_regressor_forward.5} parent=0 // pred_region
    _
  $region13: #{energy_regressor_forward.5} parent=0 // pred_fallthru
    _
  // Predicated region
  $region14: #{energy_regressor_forward.5} parent=0 // pred_check
    _
  $region15: #{energy_regressor_forward.5} parent=0 // pred_check_branch
    %17 = sbr.rel (0) target = $region17
  $region16: #{energy_regressor_forward.5} parent=0 // pred_region
    _
  $region17: #{energy_regressor_forward.5} parent=0 // pred_fallthru
    _
  // Predicated region
  $region18: #{energy_regressor_forward.5} parent=0 // pred_check
    _
  $region19: #{energy_regressor_forward.5} parent=0 // pred_check_branch
    %19 = sbr.rel (0) target = $region21
  $region20: #{energy_regressor_forward.5} parent=0 // pred_region
    _
  $region21: #{energy_regressor_forward.5} parent=0 // pred_fallthru
    _
  %v21 = vld [vmem:[%s0] sm:$0xff]
  %v22 = vld [vmem:[%s1] sm:$0xf]
  %v23 = vld [vmem:[%s1 + $0x4] sm:$0xf]
  %v24 = vld [vmem:[%s1 + $0x8] sm:$0xf]
  %v25 = vld [vmem:[%s1 + $0xc] sm:$0xf]
  %v26 = vld [vmem:[%s1 + $0x10] sm:$0xf]
  %v27 = vld [vmem:[%s1 + $0x14] sm:$0xf]
  %v28 = vld [vmem:[%s1 + $0x18] sm:$0xf]
  %v29 = vld [vmem:[%s1 + $0x1c] sm:$0xf]
  %v30 = vld [vmem:[%s1 + $0x20] sm:$0xf]
  %v31 = vld [vmem:[%s1 + $0x24] sm:$0xf]
  %v32 = vld [vmem:[%s1 + $0x28] sm:$0xf]
  %v33 = vld [vmem:[%s1 + $0x2c] sm:$0xf]
  %v34 = vld [vmem:[%s1 + $0x30] sm:$0xf]
  %v35 = vld [vmem:[%s1 + $0x34] sm:$0xf]
  %v36 = vld [vmem:[%s1 + $0x38] sm:$0xf]
  %v37 = vld [vmem:[%s1 + $0x3c] sm:$0xf]
  %v38 = vld [vmem:[%s1 + $0x40] sm:$0xf]
  %v39 = vld [vmem:[%s1 + $0x44] sm:$0xf]
  %v40 = vld [vmem:[%s1 + $0x48] sm:$0xf]
  %v41 = vld [vmem:[%s1 + $0x4c] sm:$0xf]
  %v42 = vld [vmem:[%s1 + $0x50] sm:$0xf]
  %v43 = vld [vmem:[%s1 + $0x54] sm:$0xf]
  %v44 = vld [vmem:[%s1 + $0x58] sm:$0xf]
  %v45 = vld [vmem:[%s1 + $0x5c] sm:$0xf]
  %v46 = vld [vmem:[%s1 + $0x60] sm:$0xf]
  %v47 = vld [vmem:[%s1 + $0x64] sm:$0xf]
  %v48 = vld [vmem:[%s1 + $0x68] sm:$0xf]
  %v49 = vld [vmem:[%s1 + $0x6c] sm:$0xf]
  %v50 = vld [vmem:[%s1 + $0x70] sm:$0xf]
  %v51 = vld [vmem:[%s1 + $0x74] sm:$0xf]
  %v52 = vld [vmem:[%s1 + $0x78] sm:$0xf]
  %v53 = vld [vmem:[%s1 + $0x7c] sm:$0xf]
  %v54 = vld [vmem:[%s2] sm:$0x1]
  %v56 = vlaneseq
  %v57 = vshrl.u32 %v56, 7
  %v58 = vsub.s32 0, %v57
  %v59 = vrot.slane %v54, %v58
  %v62 = vunpack.c.l.b16 %v21
  %v63 = vunpack.c.h.b16 %v21
  %v64 = vpack.c.b16 %v62, %v62
  %v65 = vpack.c.b16 %v63, %v63
  %v100 = vunpack.c.l.b16 %v22
  %v101 = vunpack.c.l.b16 %v23
  %v102 = vunpack.c.l.b16 %v24
  %v103 = vunpack.c.l.b16 %v25
  %v104 = vunpack.c.l.b16 %v26
  %v105 = vunpack.c.l.b16 %v27
  %v106 = vunpack.c.l.b16 %v28
  %v107 = vunpack.c.l.b16 %v29
  %v108 = vunpack.c.l.b16 %v30
  %v109 = vunpack.c.l.b16 %v31
  %v110 = vunpack.c.l.b16 %v32
  %v111 = vunpack.c.l.b16 %v33
  %v112 = vunpack.c.l.b16 %v34
  %v113 = vunpack.c.l.b16 %v35
  %v114 = vunpack.c.l.b16 %v36
  %v115 = vunpack.c.l.b16 %v37
  %v116 = vunpack.c.l.b16 %v38
  %v117 = vunpack.c.l.b16 %v39
  %v118 = vunpack.c.l.b16 %v40
  %v119 = vunpack.c.l.b16 %v41
  %v120 = vunpack.c.l.b16 %v42
  %v121 = vunpack.c.l.b16 %v43
  %v122 = vunpack.c.l.b16 %v44
  %v123 = vunpack.c.l.b16 %v45
  %v124 = vunpack.c.l.b16 %v46
  %v125 = vunpack.c.l.b16 %v47
  %v126 = vunpack.c.l.b16 %v48
  %v127 = vunpack.c.l.b16 %v49
  %v128 = vunpack.c.l.b16 %v50
  %v129 = vunpack.c.l.b16 %v51
  %v130 = vunpack.c.l.b16 %v52
  %v131 = vunpack.c.l.b16 %v53
  %v132 = vpack.c.b16 %v101, %v100
  %v133 = vpack.c.b16 %v103, %v102
  %v134 = vpack.c.b16 %v105, %v104
  %v135 = vpack.c.b16 %v107, %v106
  %v136 = vpack.c.b16 %v109, %v108
  %v137 = vpack.c.b16 %v111, %v110
  %v138 = vpack.c.b16 %v113, %v112
  %v139 = vpack.c.b16 %v115, %v114
  %v140 = vpack.c.b16 %v117, %v116
  %v141 = vpack.c.b16 %v119, %v118
  %v142 = vpack.c.b16 %v121, %v120
  %v143 = vpack.c.b16 %v123, %v122
  %v144 = vpack.c.b16 %v125, %v124
  %v145 = vpack.c.b16 %v127, %v126
  %v146 = vpack.c.b16 %v129, %v128
  %v147 = vpack.c.b16 %v131, %v130
  %164 = vmatprep.subr.bf16.mxu0 0
  %165 = vmatpush1.bf16.msra.mxu0 %v139
  %166 = vmatprep.subr.bf16.mxu0 0
  %167 = vmatpush1.bf16.msra.mxu0 %v138
  %168 = vmatprep.subr.bf16.mxu0 0
  %169 = vmatpush1.bf16.msra.mxu0 %v137
  %170 = vmatprep.subr.bf16.mxu0 0
  %171 = vmatpush1.bf16.msra.mxu0 %v136
  %172 = vmatprep.subr.bf16.mxu0 0
  %173 = vmatpush1.bf16.msra.mxu0 %v135
  %174 = vmatprep.subr.bf16.mxu0 0
  %175 = vmatpush1.bf16.msra.mxu0 %v134
  %176 = vmatprep.subr.bf16.mxu0 0
  %177 = vmatpush1.bf16.msra.mxu0 %v133
  %178 = vmatprep.subr.bf16.mxu0 0
  %179 = vmatpush1.bf16.msra.mxu0 %v132
  %180 = vmatprep.subr.bf16.mxu0 0
  %181 = vmatpush2.bf16.msra.mxu0 %v147
  %182 = vmatprep.subr.bf16.mxu0 0
  %183 = vmatpush2.bf16.msra.mxu0 %v146
  %184 = vmatprep.subr.bf16.mxu0 0
  %185 = vmatpush2.bf16.msra.mxu0 %v145
  %186 = vmatprep.subr.bf16.mxu0 0
  %187 = vmatpush2.bf16.msra.mxu0 %v144
  %188 = vmatprep.subr.bf16.mxu0 0
  %189 = vmatpush2.bf16.msra.mxu0 %v143
  %190 = vmatprep.subr.bf16.mxu0 0
  %191 = vmatpush2.bf16.msra.mxu0 %v142
  %192 = vmatprep.subr.bf16.mxu0 0
  %193 = vmatpush2.bf16.msra.mxu0 %v141
  %194 = vmatprep.subr.bf16.mxu0 0
  %195 = vmatpush2.bf16.msra.mxu0 %v140
  %196 = vmatprep.mubr.bf16.mxu0 %v65
  %197 = vmatmul.mubr.bf16.gmra.mxu0 %v64
  %v198 = vpop.f32.mrf.mxu0
  %v199 = vadd.f32 %v59, %v198
  %v200 = vpop.f32.mrf.mxu0
  %v201 = vpop.f32.mrf.mxu0
  %v202 = vpop.f32.mrf.mxu0
  %203 = vdwg.mxu0
  %vm204 = vcmp.ge.f32.partialorder %v199, 0.0
  %v205 = vmul.f32 %v199, 0.2
  %v206 = vsel %vm204, %v199, %v205
  %v207 = vpack.c.bf16 %v206, %v206
  %v208 = vld [vmem:[%s3] sm:$0xf]
  %v209 = vld [vmem:[%s3 + $0x4] sm:$0xf]
  %v210 = vld [vmem:[%s3 + $0x8] sm:$0xf]
  %v211 = vld [vmem:[%s3 + $0xc] sm:$0xf]
  %v212 = vld [vmem:[%s3 + $0x10] sm:$0xf]
  %v213 = vld [vmem:[%s3 + $0x14] sm:$0xf]
  %v214 = vld [vmem:[%s3 + $0x18] sm:$0xf]
  %v215 = vld [vmem:[%s3 + $0x1c] sm:$0xf]
  %v216 = vld [vmem:[%s3 + $0x20] sm:$0xf]
  %v217 = vld [vmem:[%s3 + $0x24] sm:$0xf]
  %v218 = vld [vmem:[%s3 + $0x28] sm:$0xf]
  %v219 = vld [vmem:[%s3 + $0x2c] sm:$0xf]
  %v220 = vld [vmem:[%s3 + $0x30] sm:$0xf]
  %v221 = vld [vmem:[%s3 + $0x34] sm:$0xf]
  %v222 = vld [vmem:[%s3 + $0x38] sm:$0xf]
  %v223 = vld [vmem:[%s3 + $0x3c] sm:$0xf]
  %v224 = vld [vmem:[%s4] sm:$0x1]
  %v226 = vlaneseq
  %v227 = vshrl.u32 %v226, 7
  %v228 = vsub.s32 0, %v227
  %v229 = vrot.slane %v224, %v228
  %v247 = vunpack.c.l.b16 %v208
  %v248 = vunpack.c.l.b16 %v209
  %v249 = vunpack.c.l.b16 %v210
  %v250 = vunpack.c.l.b16 %v211
  %v251 = vunpack.c.l.b16 %v212
  %v252 = vunpack.c.l.b16 %v213
  %v253 = vunpack.c.l.b16 %v214
  %v254 = vunpack.c.l.b16 %v215
  %v255 = vunpack.c.l.b16 %v216
  %v256 = vunpack.c.l.b16 %v217
  %v257 = vunpack.c.l.b16 %v218
  %v258 = vunpack.c.l.b16 %v219
  %v259 = vunpack.c.l.b16 %v220
  %v260 = vunpack.c.l.b16 %v221
  %v261 = vunpack.c.l.b16 %v222
  %v262 = vunpack.c.l.b16 %v223
  %v263 = vpack.c.b16 %v248, %v247
  %v264 = vpack.c.b16 %v250, %v249
  %v265 = vpack.c.b16 %v252, %v251
  %v266 = vpack.c.b16 %v254, %v253
  %v267 = vpack.c.b16 %v256, %v255
  %v268 = vpack.c.b16 %v258, %v257
  %v269 = vpack.c.b16 %v260, %v259
  %v270 = vpack.c.b16 %v262, %v261
  %279 = vmatprep.subr.bf16.mxu0 0
  %280 = vmatpush1.bf16.msra.mxu0 %v270
  %281 = vmatprep.subr.bf16.mxu0 0
  %282 = vmatpush1.bf16.msra.mxu0 %v269
  %283 = vmatprep.subr.bf16.mxu0 0
  %284 = vmatpush1.bf16.msra.mxu0 %v268
  %285 = vmatprep.subr.bf16.mxu0 0
  %286 = vmatpush1.bf16.msra.mxu0 %v267
  %287 = vmatprep.subr.bf16.mxu0 0
  %288 = vmatpush1.bf16.msra.mxu0 %v266
  %289 = vmatprep.subr.bf16.mxu0 0
  %290 = vmatpush1.bf16.msra.mxu0 %v265
  %291 = vmatprep.subr.bf16.mxu0 0
  %292 = vmatpush1.bf16.msra.mxu0 %v264
  %293 = vmatprep.subr.bf16.mxu0 0
  %294 = vmatpush1.bf16.msra.mxu0 %v263
  %295 = vmatprep.subr.bf16.mxu0 0
  %296 = vmatpush2.bf16.msra.mxu0 0
  %297 = vmatprep.subr.bf16.mxu0 0
  %298 = vmatpush2.bf16.msra.mxu0 0
  %299 = vmatprep.subr.bf16.mxu0 0
  %300 = vmatpush2.bf16.msra.mxu0 0
  %301 = vmatprep.subr.bf16.mxu0 0
  %302 = vmatpush2.bf16.msra.mxu0 0
  %303 = vmatprep.subr.bf16.mxu0 0
  %304 = vmatpush2.bf16.msra.mxu0 0
  %305 = vmatprep.subr.bf16.mxu0 0
  %306 = vmatpush2.bf16.msra.mxu0 0
  %307 = vmatprep.subr.bf16.mxu0 0
  %308 = vmatpush2.bf16.msra.mxu0 0
  %309 = vmatprep.subr.bf16.mxu0 0
  %310 = vmatpush2.bf16.msra.mxu0 0
  %311 = vmatprep.mubr.bf16.mxu0 0
  %312 = vmatmul.mubr.bf16.gmra.mxu0 %v207
  %v313 = vpop.f32.mrf.mxu0
  %v314 = vadd.f32 %v229, %v313
  %v315 = vpop.f32.mrf.mxu0
  %v316 = vpop.f32.mrf.mxu0
  %v317 = vpop.f32.mrf.mxu0
  %318 = vdwg.mxu0
  %v319 = vmax.f32 %v314, 0.0
  %320 = vst [vmem:[%s5] sm:$0xff] %v319
  // Predicated region
  $region22: #{energy_regressor_forward.5} parent=0 // pred_check
    _
  $region23: #{energy_regressor_forward.5} parent=0 // pred_check_branch
    %322 = sbr.rel (0) target = $region25
  $region24: #{energy_regressor_forward.5} parent=0 // pred_region
    _
  $region25: #{energy_regressor_forward.5} parent=0 // pred_fallthru
    _
  // Predicated region
  $region26: #{energy_regressor_forward.5} parent=0 // pred_check
    _
  $region27: #{energy_regressor_forward.5} parent=0 // pred_check_branch
    %324 = sbr.rel (0) target = $region29
  $region28: #{energy_regressor_forward.5} parent=0 // pred_region
    _
  $region29: #{energy_regressor_forward.5} parent=0 // pred_fallthru
    _

// kernel: energy_regressor_forward.4
$region0: #{energy_regressor_forward.4}
  #allocation0 [shape = 'u32[]', space=smem, size = 0x4, offset = 0x4, fixed_abs, tag = 'smem constant byte address 0x4 - core index']
  #allocation1 [shape = 'u32[144,128]{1,0:T(1,128)}', space=vmem, size = 0x12000, scoped, tag = 'internal scratch']
  #allocation2 [shape = 'f32[8,256]{1,0:T(8,128)}', space=vmem, size = 0x2000, scoped, tag = 'scratch operand']
  %s0 = inlined_call_operand.vmem [shape: bf16[8,512], index: 0, kind: input, shape index: {}]
  %s1 = inlined_call_operand.vmem [shape: bf16[512,256], index: 1, kind: input, shape index: {}]
  %s2 = inlined_call_operand.vmem [shape: f32[1,256], index: 2, kind: input, shape index: {}]
  %s3 = inlined_call_operand.vmem [shape: f32[1,256], index: 3, kind: input, shape index: {}]
  %s4 = inlined_call_operand.vmem [shape: bf16[8,256], index: 4, kind: output, shape index: {}]
  %s5 = sld [smem:[#allocation0]]
  $region34: #{energy_regressor_forward.4} parent=0
    _
  %s7 = ssub.s32 1, %s5
  %s8 = scalar_select 0, %s7, %s5
  // Predicated region
  $region2: #{energy_regressor_forward.4} parent=0 // pred_check
    _
  $region3: #{energy_regressor_forward.4} parent=0 // pred_check_branch
    %10 = sbr.rel (0) target = $region5
  $region4: #{energy_regressor_forward.4} parent=0 // pred_region
    _
  $region5: #{energy_regressor_forward.4} parent=0 // pred_fallthru
    _
  // Predicated region
  $region6: #{energy_regressor_forward.4} parent=0 // pred_check
    _
  $region7: #{energy_regressor_forward.4} parent=0 // pred_check_branch
    %12 = sbr.rel (0) target = $region9
  $region8: #{energy_regressor_forward.4} parent=0 // pred_region
    _
  $region9: #{energy_regressor_forward.4} parent=0 // pred_fallthru
    _
  // Predicated region
  $region10: #{energy_regressor_forward.4} parent=0 // pred_check
    _
  $region11: #{energy_regressor_forward.4} parent=0 // pred_check_branch
    %14 = sbr.rel (0) target = $region13
  $region12: #{energy_regressor_forward.4} parent=0 // pred_region
    _
  $region13: #{energy_regressor_forward.4} parent=0 // pred_fallthru
    _
  // Predicated region
  $region14: #{energy_regressor_forward.4} parent=0 // pred_check
    _
  $region15: #{energy_regressor_forward.4} parent=0 // pred_check_branch
    %16 = sbr.rel (0) target = $region17
  $region16: #{energy_regressor_forward.4} parent=0 // pred_region
    _
  $region17: #{energy_regressor_forward.4} parent=0 // pred_fallthru
    _
  %p17 = scmp.eq.s32.totalorder 0, 0
  // Predicated region
  $region18: #{energy_regressor_forward.4} parent=0 // pred_check
    %p18 = pneg %p17
  $region19: #{energy_regressor_forward.4} parent=0 // pred_check_branch
    %20 = sbr.rel (%p18) target = $region21
  $region20: #{energy_regressor_forward.4} parent=0 // pred_region
    %21 = vst [vmem:[#allocation2] sm:$0xff] 0.0
    %22 = vst [vmem:[#allocation2 + $0x8] sm:$0xff] 0.0
  $region21: #{energy_regressor_forward.4} parent=0 // pred_fallthru
    _
  %v23 = vld [vmem:[#allocation2] sm:$0xff]
  %v24 = vld [vmem:[#allocation2 + $0x8] sm:$0xff]
  %v25 = vld [vmem:[%s0] sm:$0xff]
  %v26 = vld [vmem:[%s0 + $0x8] sm:$0xff]
  %v27 = vld [vmem:[%s1] sm:$0xff]
  %v28 = vld [vmem:[%s1 + $0x8] sm:$0xff]
  %v29 = vld [vmem:[%s1 + $0x10] sm:$0xff]
  %v30 = vld [vmem:[%s1 + $0x18] sm:$0xff]
  %v31 = vld [vmem:[%s1 + $0x20] sm:$0xff]
  %v32 = vld [vmem:[%s1 + $0x28] sm:$0xff]
  %v33 = vld [vmem:[%s1 + $0x30] sm:$0xff]
  %v34 = vld [vmem:[%s1 + $0x38] sm:$0xff]
  %v35 = vld [vmem:[%s1 + $0x40] sm:$0xff]
  %v36 = vld [vmem:[%s1 + $0x48] sm:$0xff]
  %v37 = vld [vmem:[%s1 + $0x50] sm:$0xff]
  %v38 = vld [vmem:[%s1 + $0x58] sm:$0xff]
  %v39 = vld [vmem:[%s1 + $0x60] sm:$0xff]
  %v40 = vld [vmem:[%s1 + $0x68] sm:$0xff]
  %v41 = vld [vmem:[%s1 + $0x70] sm:$0xff]
  %v42 = vld [vmem:[%s1 + $0x78] sm:$0xff]
  %v43 = vld [vmem:[%s1 + $0x80] sm:$0xff]
  %v44 = vld [vmem:[%s1 + $0x88] sm:$0xff]
  %v45 = vld [vmem:[%s1 + $0x90] sm:$0xff]
  %v46 = vld [vmem:[%s1 + $0x98] sm:$0xff]
  %v47 = vld [vmem:[%s1 + $0xa0] sm:$0xff]
  %v48 = vld [vmem:[%s1 + $0xa8] sm:$0xff]
  %v49 = vld [vmem:[%s1 + $0xb0] sm:$0xff]
  %v50 = vld [vmem:[%s1 + $0xb8] sm:$0xff]
  %v51 = vld [vmem:[%s1 + $0xc0] sm:$0xff]
  %v52 = vld [vmem:[%s1 + $0xc8] sm:$0xff]
  %v53 = vld [vmem:[%s1 + $0xd0] sm:$0xff]
  %v54 = vld [vmem:[%s1 + $0xd8] sm:$0xff]
  %v55 = vld [vmem:[%s1 + $0xe0] sm:$0xff]
  %v56 = vld [vmem:[%s1 + $0xe8] sm:$0xff]
  %v57 = vld [vmem:[%s1 + $0xf0] sm:$0xff]
  %v58 = vld [vmem:[%s1 + $0xf8] sm:$0xff]
  %v59 = vld [vmem:[%s1 + $0x100] sm:$0xff]
  %v60 = vld [vmem:[%s1 + $0x108] sm:$0xff]
  %v61 = vld [vmem:[%s1 + $0x110] sm:$0xff]
  %v62 = vld [vmem:[%s1 + $0x118] sm:$0xff]
  %v63 = vld [vmem:[%s1 + $0x120] sm:$0xff]
  %v64 = vld [vmem:[%s1 + $0x128] sm:$0xff]
  %v65 = vld [vmem:[%s1 + $0x130] sm:$0xff]
  %v66 = vld [vmem:[%s1 + $0x138] sm:$0xff]
  %v67 = vld [vmem:[%s1 + $0x140] sm:$0xff]
  %v68 = vld [vmem:[%s1 + $0x148] sm:$0xff]
  %v69 = vld [vmem:[%s1 + $0x150] sm:$0xff]
  %v70 = vld [vmem:[%s1 + $0x158] sm:$0xff]
  %v71 = vld [vmem:[%s1 + $0x160] sm:$0xff]
  %v72 = vld [vmem:[%s1 + $0x168] sm:$0xff]
  %v73 = vld [vmem:[%s1 + $0x170] sm:$0xff]
  %v74 = vld [vmem:[%s1 + $0x178] sm:$0xff]
  %v75 = vld [vmem:[%s1 + $0x180] sm:$0xff]
  %v76 = vld [vmem:[%s1 + $0x188] sm:$0xff]
  %v77 = vld [vmem:[%s1 + $0x190] sm:$0xff]
  %v78 = vld [vmem:[%s1 + $0x198] sm:$0xff]
  %v79 = vld [vmem:[%s1 + $0x1a0] sm:$0xff]
  %v80 = vld [vmem:[%s1 + $0x1a8] sm:$0xff]
  %v81 = vld [vmem:[%s1 + $0x1b0] sm:$0xff]
  %v82 = vld [vmem:[%s1 + $0x1b8] sm:$0xff]
  %v83 = vld [vmem:[%s1 + $0x1c0] sm:$0xff]
  %v84 = vld [vmem:[%s1 + $0x1c8] sm:$0xff]
  %v85 = vld [vmem:[%s1 + $0x1d0] sm:$0xff]
  %v86 = vld [vmem:[%s1 + $0x1d8] sm:$0xff]
  %v87 = vld [vmem:[%s1 + $0x1e0] sm:$0xff]
  %v88 = vld [vmem:[%s1 + $0x1e8] sm:$0xff]
  %v89 = vld [vmem:[%s1 + $0x1f0] sm:$0xff]
  %v90 = vld [vmem:[%s1 + $0x1f8] sm:$0xff]
  %v93 = vunpack.c.l.b16 %v25
  %v94 = vunpack.c.h.b16 %v25
  %v95 = vunpack.c.l.b16 %v26
  %v96 = vunpack.c.h.b16 %v26
  %v97 = vpack.c.b16 %v93, %v93
  %v98 = vpack.c.b16 %v94, %v94
  %v99 = vpack.c.b16 %v95, %v95
  %v100 = vpack.c.b16 %v96, %v96
  %v169 = vunpack.c.l.b16 %v27
  %v170 = vunpack.c.h.b16 %v27
  %v171 = vunpack.c.l.b16 %v28
  %v172 = vunpack.c.h.b16 %v28
  %v173 = vunpack.c.l.b16 %v29
  %v174 = vunpack.c.h.b16 %v29
  %v175 = vunpack.c.l.b16 %v30
  %v176 = vunpack.c.h.b16 %v30
  %v177 = vunpack.c.l.b16 %v31
  %v178 = vunpack.c.h.b16 %v31
  %v179 = vunpack.c.l.b16 %v32
  %v180 = vunpack.c.h.b16 %v32
  %v181 = vunpack.c.l.b16 %v33
  %v182 = vunpack.c.h.b16 %v33
  %v183 = vunpack.c.l.b16 %v34
  %v184 = vunpack.c.h.b16 %v34
  %v185 = vunpack.c.l.b16 %v35
  %v186 = vunpack.c.h.b16 %v35
  %v187 = vunpack.c.l.b16 %v36
  %v188 = vunpack.c.h.b16 %v36
  %v189 = vunpack.c.l.b16 %v37
  %v190 = vunpack.c.h.b16 %v37
  %v191 = vunpack.c.l.b16 %v38
  %v192 = vunpack.c.h.b16 %v38
  %v193 = vunpack.c.l.b16 %v39
  %v194 = vunpack.c.h.b16 %v39
  %v195 = vunpack.c.l.b16 %v40
  %v196 = vunpack.c.h.b16 %v40
  %v197 = vunpack.c.l.b16 %v41
  %v198 = vunpack.c.h.b16 %v41
  %v199 = vunpack.c.l.b16 %v42
  %v200 = vunpack.c.h.b16 %v42
  %v201 = vunpack.c.l.b16 %v43
  %v202 = vunpack.c.h.b16 %v43
  %v203 = vunpack.c.l.b16 %v44
  %v204 = vunpack.c.h.b16 %v44
  %v205 = vunpack.c.l.b16 %v45
  %v206 = vunpack.c.h.b16 %v45
  %v207 = vunpack.c.l.b16 %v46
  %v208 = vunpack.c.h.b16 %v46
  %v209 = vunpack.c.l.b16 %v47
  %v210 = vunpack.c.h.b16 %v47
  %v211 = vunpack.c.l.b16 %v48
  %v212 = vunpack.c.h.b16 %v48
  %v213 = vunpack.c.l.b16 %v49
  %v214 = vunpack.c.h.b16 %v49
  %v215 = vunpack.c.l.b16 %v50
  %v216 = vunpack.c.h.b16 %v50
  %v217 = vunpack.c.l.b16 %v51
  %v218 = vunpack.c.h.b16 %v51
  %v219 = vunpack.c.l.b16 %v52
  %v220 = vunpack.c.h.b16 %v52
  %v221 = vunpack.c.l.b16 %v53
  %v222 = vunpack.c.h.b16 %v53
  %v223 = vunpack.c.l.b16 %v54
  %v224 = vunpack.c.h.b16 %v54
  %v225 = vunpack.c.l.b16 %v55
  %v226 = vunpack.c.h.b16 %v55
  %v227 = vunpack.c.l.b16 %v56
  %v228 = vunpack.c.h.b16 %v56
  %v229 = vunpack.c.l.b16 %v57
  %v230 = vunpack.c.h.b16 %v57
  %v231 = vunpack.c.l.b16 %v58
  %v232 = vunpack.c.h.b16 %v58
  %v233 = vunpack.c.l.b16 %v59
  %v234 = vunpack.c.h.b16 %v59
  %v235 = vunpack.c.l.b16 %v60
  %v236 = vunpack.c.h.b16 %v60
  %v237 = vunpack.c.l.b16 %v61
  %v238 = vunpack.c.h.b16 %v61
  %v239 = vunpack.c.l.b16 %v62
  %v240 = vunpack.c.h.b16 %v62
  %v241 = vunpack.c.l.b16 %v63
  %v242 = vunpack.c.h.b16 %v63
  %v243 = vunpack.c.l.b16 %v64
  %v244 = vunpack.c.h.b16 %v64
  %v245 = vunpack.c.l.b16 %v65
  %v246 = vunpack.c.h.b16 %v65
  %v247 = vunpack.c.l.b16 %v66
  %v248 = vunpack.c.h.b16 %v66
  %v249 = vunpack.c.l.b16 %v67
  %v250 = vunpack.c.h.b16 %v67
  %v251 = vunpack.c.l.b16 %v68
  %v252 = vunpack.c.h.b16 %v68
  %v253 = vunpack.c.l.b16 %v69
  %v254 = vunpack.c.h.b16 %v69
  %v255 = vunpack.c.l.b16 %v70
  %v256 = vunpack.c.h.b16 %v70
  %v257 = vunpack.c.l.b16 %v71
  %v258 = vunpack.c.h.b16 %v71
  %v259 = vunpack.c.l.b16 %v72
  %v260 = vunpack.c.h.b16 %v72
  %v261 = vunpack.c.l.b16 %v73
  %v262 = vunpack.c.h.b16 %v73
  %v263 = vunpack.c.l.b16 %v74
  %v264 = vunpack.c.h.b16 %v74
  %v265 = vunpack.c.l.b16 %v75
  %v266 = vunpack.c.h.b16 %v75
  %v267 = vunpack.c.l.b16 %v76
  %v268 = vunpack.c.h.b16 %v76
  %v269 = vunpack.c.l.b16 %v77
  %v270 = vunpack.c.h.b16 %v77
  %v271 = vunpack.c.l.b16 %v78
  %v272 = vunpack.c.h.b16 %v78
  %v273 = vunpack.c.l.b16 %v79
  %v274 = vunpack.c.h.b16 %v79
  %v275 = vunpack.c.l.b16 %v80
  %v276 = vunpack.c.h.b16 %v80
  %v277 = vunpack.c.l.b16 %v81
  %v278 = vunpack.c.h.b16 %v81
  %v279 = vunpack.c.l.b16 %v82
  %v280 = vunpack.c.h.b16 %v82
  %v281 = vunpack.c.l.b16 %v83
  %v282 = vunpack.c.h.b16 %v83
  %v283 = vunpack.c.l.b16 %v84
  %v284 = vunpack.c.h.b16 %v84
  %v285 = vunpack.c.l.b16 %v85
  %v286 = vunpack.c.h.b16 %v85
  %v287 = vunpack.c.l.b16 %v86
  %v288 = vunpack.c.h.b16 %v86
  %v289 = vunpack.c.l.b16 %v87
  %v290 = vunpack.c.h.b16 %v87
  %v291 = vunpack.c.l.b16 %v88
  %v292 = vunpack.c.h.b16 %v88
  %v293 = vunpack.c.l.b16 %v89
  %v294 = vunpack.c.h.b16 %v89
  %v295 = vunpack.c.l.b16 %v90
  %v296 = vunpack.c.h.b16 %v90
  %v297 = vpack.c.b16 %v171, %v169
  %v298 = vpack.c.b16 %v172, %v170
  %v299 = vpack.c.b16 %v175, %v173
  %v300 = vpack.c.b16 %v176, %v174
  %v301 = vpack.c.b16 %v179, %v177
  %v302 = vpack.c.b16 %v180, %v178
  %v303 = vpack.c.b16 %v183, %v181
  %v304 = vpack.c.b16 %v184, %v182
  %v305 = vpack.c.b16 %v187, %v185
  %v306 = vpack.c.b16 %v188, %v186
  %v307 = vpack.c.b16 %v191, %v189
  %v308 = vpack.c.b16 %v192, %v190
  %v309 = vpack.c.b16 %v195, %v193
  %v310 = vpack.c.b16 %v196, %v194
  %v311 = vpack.c.b16 %v199, %v197
  %v312 = vpack.c.b16 %v200, %v198
  %v313 = vpack.c.b16 %v203, %v201
  %v314 = vpack.c.b16 %v204, %v202
  %v315 = vpack.c.b16 %v207, %v205
  %v316 = vpack.c.b16 %v208, %v206
  %v317 = vpack.c.b16 %v211, %v209
  %v318 = vpack.c.b16 %v212, %v210
  %v319 = vpack.c.b16 %v215, %v213
  %v320 = vpack.c.b16 %v216, %v214
  %v321 = vpack.c.b16 %v219, %v217
  %v322 = vpack.c.b16 %v220, %v218
  %v323 = vpack.c.b16 %v223, %v221
  %v324 = vpack.c.b16 %v224, %v222
  %v325 = vpack.c.b16 %v227, %v225
  %v326 = vpack.c.b16 %v228, %v226
  %v327 = vpack.c.b16 %v231, %v229
  %v328 = vpack.c.b16 %v232, %v230
  %v329 = vpack.c.b16 %v235, %v233
  %v330 = vpack.c.b16 %v236, %v234
  %v331 = vpack.c.b16 %v239, %v237
  %v332 = vpack.c.b16 %v240, %v238
  %v333 = vpack.c.b16 %v243, %v241
  %v334 = vpack.c.b16 %v244, %v242
  %v335 = vpack.c.b16 %v247, %v245
  %v336 = vpack.c.b16 %v248, %v246
  %v337 = vpack.c.b16 %v251, %v249
  %v338 = vpack.c.b16 %v252, %v250
  %v339 = vpack.c.b16 %v255, %v253
  %v340 = vpack.c.b16 %v256, %v254
  %v341 = vpack.c.b16 %v259, %v257
  %v342 = vpack.c.b16 %v260, %v258
  %v343 = vpack.c.b16 %v263, %v261
  %v344 = vpack.c.b16 %v264, %v262
  %v345 = vpack.c.b16 %v267, %v265
  %v346 = vpack.c.b16 %v268, %v266
  %v347 = vpack.c.b16 %v271, %v269
  %v348 = vpack.c.b16 %v272, %v270
  %v349 = vpack.c.b16 %v275, %v273
  %v350 = vpack.c.b16 %v276, %v274
  %v351 = vpack.c.b16 %v279, %v277
  %v352 = vpack.c.b16 %v280, %v278
  %v353 = vpack.c.b16 %v283, %v281
  %v354 = vpack.c.b16 %v284, %v282
  %v355 = vpack.c.b16 %v287, %v285
  %v356 = vpack.c.b16 %v288, %v286
  %v357 = vpack.c.b16 %v291, %v289
  %v358 = vpack.c.b16 %v292, %v290
  %v359 = vpack.c.b16 %v295, %v293
  %v360 = vpack.c.b16 %v296, %v294
  %425 = vmatprep.subr.bf16.mxu0 %v312
  %426 = vmatpush1.bf16.msra.mxu0 %v311
  %427 = vmatprep.subr.bf16.mxu0 %v310
  %428 = vmatpush1.bf16.msra.mxu0 %v309
  %429 = vmatprep.subr.bf16.mxu0 %v308
  %430 = vmatpush1.bf16.msra.mxu0 %v307
  %431 = vmatprep.subr.bf16.mxu0 %v306
  %432 = vmatpush1.bf16.msra.mxu0 %v305
  %433 = vmatprep.subr.bf16.mxu0 %v304
  %434 = vmatpush1.bf16.msra.mxu0 %v303
  %435 = vmatprep.subr.bf16.mxu0 %v302
  %436 = vmatpush1.bf16.msra.mxu0 %v301
  %437 = vmatprep.subr.bf16.mxu0 %v300
  %438 = vmatpush1.bf16.msra.mxu0 %v299
  %439 = vmatprep.subr.bf16.mxu0 %v298
  %440 = vmatpush1.bf16.msra.mxu0 %v297
  %441 = vmatprep.subr.bf16.mxu0 %v328
  %442 = vmatpush2.bf16.msra.mxu0 %v327
  %443 = vmatprep.subr.bf16.mxu0 %v326
  %444 = vmatpush2.bf16.msra.mxu0 %v325
  %445 = vmatprep.subr.bf16.mxu0 %v324
  %446 = vmatpush2.bf16.msra.mxu0 %v323
  %447 = vmatprep.subr.bf16.mxu0 %v322
  %448 = vmatpush2.bf16.msra.mxu0 %v321
  %449 = vmatprep.subr.bf16.mxu0 %v320
  %450 = vmatpush2.bf16.msra.mxu0 %v319
  %451 = vmatprep.subr.bf16.mxu0 %v318
  %452 = vmatpush2.bf16.msra.mxu0 %v317
  %453 = vmatprep.subr.bf16.mxu0 %v316
  %454 = vmatpush2.bf16.msra.mxu0 %v315
  %455 = vmatprep.subr.bf16.mxu0 %v314
  %456 = vmatpush2.bf16.msra.mxu0 %v313
  %457 = vmatprep.mubr.bf16.mxu0 %v98
  %458 = vmatmul.mubr.bf16.gmra.mxu0 %v97
  %v459 = vpop.f32.mrf.mxu0
  %v460 = vadd.f32 0.0, %v459
  %v461 = vpop.f32.mrf.mxu0
  %v462 = vadd.f32 0.0, %v461
  %v463 = vpop.f32.mrf.mxu0
  %v464 = vpop.f32.mrf.mxu0
  %465 = vdwg.mxu0
  %466 = vmatprep.subr.bf16.mxu0 %v344
  %467 = vmatpush1.bf16.msra.mxu0 %v343
  %468 = vmatprep.subr.bf16.mxu0 %v342
  %469 = vmatpush1.bf16.msra.mxu0 %v341
  %470 = vmatprep.subr.bf16.mxu0 %v340
  %471 = vmatpush1.bf16.msra.mxu0 %v339
  %472 = vmatprep.subr.bf16.mxu0 %v338
  %473 = vmatpush1.bf16.msra.mxu0 %v337
  %474 = vmatprep.subr.bf16.mxu0 %v336
  %475 = vmatpush1.bf16.msra.mxu0 %v335
  %476 = vmatprep.subr.bf16.mxu0 %v334
  %477 = vmatpush1.bf16.msra.mxu0 %v333
  %478 = vmatprep.subr.bf16.mxu0 %v332
  %479 = vmatpush1.bf16.msra.mxu0 %v331
  %480 = vmatprep.subr.bf16.mxu0 %v330
  %481 = vmatpush1.bf16.msra.mxu0 %v329
  %482 = vmatprep.subr.bf16.mxu0 %v360
  %483 = vmatpush2.bf16.msra.mxu0 %v359
  %484 = vmatprep.subr.bf16.mxu0 %v358
  %485 = vmatpush2.bf16.msra.mxu0 %v357
  %486 = vmatprep.subr.bf16.mxu0 %v356
  %487 = vmatpush2.bf16.msra.mxu0 %v355
  %488 = vmatprep.subr.bf16.mxu0 %v354
  %489 = vmatpush2.bf16.msra.mxu0 %v353
  %490 = vmatprep.subr.bf16.mxu0 %v352
  %491 = vmatpush2.bf16.msra.mxu0 %v351
  %492 = vmatprep.subr.bf16.mxu0 %v350
  %493 = vmatpush2.bf16.msra.mxu0 %v349
  %494 = vmatprep.subr.bf16.mxu0 %v348
  %495 = vmatpush2.bf16.msra.mxu0 %v347
  %496 = vmatprep.subr.bf16.mxu0 %v346
  %497 = vmatpush2.bf16.msra.mxu0 %v345
  %498 = vmatprep.mubr.bf16.mxu0 %v100
  %499 = vmatmul.mubr.bf16.gmra.mxu0 %v99
  %v500 = vpop.f32.mrf.mxu0
  %v501 = vadd.f32 %v460, %v500
  %v502 = vpop.f32.mrf.mxu0
  %v503 = vadd.f32 %v462, %v502
  %v504 = vpop.f32.mrf.mxu0
  %v505 = vpop.f32.mrf.mxu0
  %506 = vdwg.mxu0
  %v507 = vadd.f32 %v23, %v501
  %v508 = vadd.f32 %v24, %v503
  %509 = vst [vmem:[#allocation2] sm:$0xff] %v507
  %510 = vst [vmem:[#allocation2 + $0x8] sm:$0xff] %v508
  // Predicated region
  $region22: #{energy_regressor_forward.4} parent=0 // pred_check
    %p511 = pneg %p17
  $region23: #{energy_regressor_forward.4} parent=0 // pred_check_branch
    %513 = sbr.rel (%p511) target = $region25
  $region24: #{energy_regressor_forward.4} parent=0 // pred_region
    %v514 = vld [vmem:[#allocation2] sm:$0xff]
    %v515 = vld [vmem:[#allocation2 + $0x8] sm:$0xff]
    %v516 = vld [vmem:[%s2] sm:$0x3]
    %v518 = vlaneseq
    %v519 = vshrl.u32 %v518, 7
    %v520 = vsub.s32 0, %v519
    %v521 = vrot.slane %v516, %v520
    %v522 = vlaneseq
    %v523 = vshrl.u32 %v522, 7
    %v524 = vsub.s32 1, %v523
    %v525 = vrot.slane %v516, %v524
    %v528 = vmul.f32 %v514, %v521
    %v529 = vmul.f32 %v515, %v525
    %v530 = vld [vmem:[%s3] sm:$0x3]
    %v532 = vlaneseq
    %v533 = vshrl.u32 %v532, 7
    %v534 = vsub.s32 0, %v533
    %v535 = vrot.slane %v530, %v534
    %v536 = vlaneseq
    %v537 = vshrl.u32 %v536, 7
    %v538 = vsub.s32 1, %v537
    %v539 = vrot.slane %v530, %v538
    %v542 = vadd.f32 %v528, %v535
    %v543 = vadd.f32 %v529, %v539
    %vm544 = vcmp.ge.f32.partialorder %v542, 0.0
    %vm545 = vcmp.ge.f32.partialorder %v543, 0.0
    %v546 = vmul.f32 %v542, 0.2
    %v547 = vmul.f32 %v543, 0.2
    %v548 = vsel %vm544, %v542, %v546
    %v549 = vsel %vm545, %v543, %v547
    %v550 = vpack.c.bf16 %v548, %v548
    %v551 = vpack.c.bf16 %v549, %v549
    %v554 = vunpack.c.l.b16 %v550
    %v555 = vunpack.c.l.b16 %v551
    %v556 = vpack.c.b16 %v555, %v554
    %558 = vst [vmem:[%s4] sm:$0xff] %v556
  $region25: #{energy_regressor_forward.4} parent=0 // pred_fallthru
    _
  // Predicated region
  $region26: #{energy_regressor_forward.4} parent=0 // pred_check
    _
  $region27: #{energy_regressor_forward.4} parent=0 // pred_check_branch
    %560 = sbr.rel (0) target = $region29
  $region28: #{energy_regressor_forward.4} parent=0 // pred_region
    _
  $region29: #{energy_regressor_forward.4} parent=0 // pred_fallthru
    _
  // Predicated region
  $region30: #{energy_regressor_forward.4} parent=0 // pred_check
    _
  $region31: #{energy_regressor_forward.4} parent=0 // pred_check_branch
    %562 = sbr.rel (0) target = $region33
  $region32: #{energy_regressor_forward.4} parent=0 // pred_region
    _
  $region33: #{energy_regressor_forward.4} parent=0 // pred_fallthru
    _

// kernel: energy_regressor_forward.3
$region0: #{energy_regressor_forward.3}
  #allocation0 [shape = 'u32[]', space=smem, size = 0x4, offset = 0x4, fixed_abs, tag = 'smem constant byte address 0x4 - core index']
  #allocation1 [shape = 'u32[144,128]{1,0:T(1,128)}', space=vmem, size = 0x12000, scoped, tag = 'internal scratch']
  #allocation2 [shape = 'f32[8,512]{1,0:T(8,128)}', space=vmem, size = 0x4000, scoped, tag = 'scratch operand']
  %s0 = inlined_call_operand.vmem [shape: bf16[8,1024], index: 0, kind: input, shape index: {}]
  %s1 = inlined_call_operand.hbm [shape: bf16[1024,512], index: 1, kind: input, shape index: {}]
  %s2 = inlined_call_operand.vmem [shape: f32[1,512], index: 2, kind: input, shape index: {}]
  %s3 = inlined_call_operand.vmem [shape: f32[1,512], index: 3, kind: input, shape index: {}]
  %s4 = inlined_call_operand.vmem [shape: bf16[8,512], index: 4, kind: output, shape index: {}]
  %s5 = sld [smem:[#allocation0]]
  $region38: #{energy_regressor_forward.3} parent=0
    _
  %s7 = ssub.s32 1, %s5
  %s8 = scalar_select 0, %s7, %s5
  $region1: #{energy_regressor_forward.3} parent=0
    #allocation3 [shape = 'u8[1048576]{0}', space=vmem, size = 0x100000, scoped, tag = 'input window, operand 1, single buffered']
    #allocation4 [shape = 's32[1]{0}', space=sflag, size = 0x4, scoped, tag = 'scoped memory for energy_regressor_forward.3']
    %9 = vsyncpa [#allocation4], 0
    // Predicated region
    $region2: #{energy_regressor_forward.3} parent=1 // pred_check
      _
    $region3: #{energy_regressor_forward.3} parent=1 // pred_check_branch
      %11 = sbr.rel (0) target = $region5
    $region4: #{energy_regressor_forward.3} parent=1 // pred_region
      _
    $region5: #{energy_regressor_forward.3} parent=1 // pred_fallthru
      _
    // Predicated region
    $region6: #{energy_regressor_forward.3} parent=1 // pred_check
      _
    $region7: #{energy_regressor_forward.3} parent=1 // pred_check_branch
      %13 = sbr.rel (0) target = $region9
    $region8: #{energy_regressor_forward.3} parent=1 // pred_region
      %s15 = ssub.s32 32768, 32768
      %16 = vsyncadd [#allocation4], %s15
      %s17 = sshll.u32 [#allocation3], 4
      %s18 = int_to_ptr.vmem [resolvable:$true] %s17
      %23 = dma.hbm_to_vmem [thread:$0]  %s1, 32768, %s18, [#allocation4], 256, 256, 16
    $region9: #{energy_regressor_forward.3} parent=1 // pred_fallthru
      _
    // Predicated region
    $region10: #{energy_regressor_forward.3} parent=1 // pred_check
      _
    $region11: #{energy_regressor_forward.3} parent=1 // pred_check_branch
      %25 = sbr.rel (0) target = $region13
    $region12: #{energy_regressor_forward.3} parent=1 // pred_region
      _
    $region13: #{energy_regressor_forward.3} parent=1 // pred_fallthru
      _
    // Predicated region
    $region14: #{energy_regressor_forward.3} parent=1 // pred_check
      _
    $region15: #{energy_regressor_forward.3} parent=1 // pred_check_branch
      %27 = sbr.rel (0) target = $region17
    $region16: #{energy_regressor_forward.3} parent=1 // pred_region
      _
    $region17: #{energy_regressor_forward.3} parent=1 // pred_fallthru
      _
    // Predicated region
    $region18: #{energy_regressor_forward.3} parent=1 // pred_check
      _
    $region19: #{energy_regressor_forward.3} parent=1 // pred_check_branch
      %29 = sbr.rel (0) target = $region21
    $region20: #{energy_regressor_forward.3} parent=1 // pred_region
      %30 = dma.done [#allocation4], 32768
    $region21: #{energy_regressor_forward.3} parent=1 // pred_fallthru
      _
    %p31 = scmp.eq.s32.totalorder 0, 0
    // Predicated region
    $region22: #{energy_regressor_forward.3} parent=1 // pred_check
      %p32 = pneg %p31
    $region23: #{energy_regressor_forward.3} parent=1 // pred_check_branch
      %34 = sbr.rel (%p32) target = $region25
    $region24: #{energy_regressor_forward.3} parent=1 // pred_region
      %35 = vst [vmem:[#allocation2] sm:$0xff] 0.0
      %36 = vst [vmem:[#allocation2 + $0x8] sm:$0xff] 0.0
      %37 = vst [vmem:[#allocation2 + $0x10] sm:$0xff] 0.0
      %38 = vst [vmem:[#allocation2 + $0x18] sm:$0xff] 0.0
    $region25: #{energy_regressor_forward.3} parent=1 // pred_fallthru
      _
    %v39 = vld [vmem:[#allocation2] sm:$0xff]
    %v40 = vld [vmem:[#allocation2 + $0x8] sm:$0xff]
    %v41 = vld [vmem:[#allocation2 + $0x10] sm:$0xff]
    %v42 = vld [vmem:[#allocation2 + $0x18] sm:$0xff]
    %v43 = vld [vmem:[%s0] sm:$0xff]
    %v44 = vld [vmem:[%s0 + $0x8] sm:$0xff]
    %v45 = vld [vmem:[%s0 + $0x10] sm:$0xff]
    %v46 = vld [vmem:[%s0 + $0x18] sm:$0xff]
    %v47 = vld [vmem:[#allocation3] sm:$0xff]
    %v48 = vld [vmem:[#allocation3 + $0x8] sm:$0xff]
    %v49 = vld [vmem:[#allocation3 + $0x10] sm:$0xff]
    %v50 = vld [vmem:[#allocation3 + $0x18] sm:$0xff]
    %v51 = vld [vmem:[#allocation3 + $0x20] sm:$0xff]
    %v52 = vld [vmem:[#allocation3 + $0x28] sm:$0xff]
    %v53 = vld [vmem:[#allocation3 + $0x30] sm:$0xff]
    %v54 = vld [vmem:[#allocation3 + $0x38] sm:$0xff]
    %v55 = vld [vmem:[#allocation3 + $0x40] sm:$0xff]
    %v56 = vld [vmem:[#allocation3 + $0x48] sm:$0xff]
    %v57 = vld [vmem:[#allocation3 + $0x50] sm:$0xff]
    %v58 = vld [vmem:[#allocation3 + $0x58] sm:$0xff]
    %v59 = vld [vmem:[#allocation3 + $0x60] sm:$0xff]
    %v60 = vld [vmem:[#allocation3 + $0x68] sm:$0xff]
    %v61 = vld [vmem:[#allocation3 + $0x70] sm:$0xff]
    %v62 = vld [vmem:[#allocation3 + $0x78] sm:$0xff]
    %v63 = vld [vmem:[#allocation3 + $0x80] sm:$0xff]
    %v64 = vld [vmem:[#allocation3 + $0x88] sm:$0xff]
    %v65 = vld [vmem:[#allocation3 + $0x90] sm:$0xff]
    %v66 = vld [vmem:[#allocation3 + $0x98] sm:$0xff]
    %v67 = vld [vmem:[#allocation3 + $0xa0] sm:$0xff]
    %v68 = vld [vmem:[#allocation3 + $0xa8] sm:$0xff]
    %v69 = vld [vmem:[#allocation3 + $0xb0] sm:$0xff]
    %v70 = vld [vmem:[#allocation3 + $0xb8] sm:$0xff]
    %v71 = vld [vmem:[#allocation3 + $0xc0] sm:$0xff]
    %v72 = vld [vmem:[#allocation3 + $0xc8] sm:$0xff]
    %v73 = vld [vmem:[#allocation3 + $0xd0] sm:$0xff]
    %v74 = vld [vmem:[#allocation3 + $0xd8] sm:$0xff]
    %v75 = vld [vmem:[#allocation3 + $0xe0] sm:$0xff]
    %v76 = vld [vmem:[#allocation3 + $0xe8] sm:$0xff]
    %v77 = vld [vmem:[#allocation3 + $0xf0] sm:$0xff]
    %v78 = vld [vmem:[#allocation3 + $0xf8] sm:$0xff]
    %v79 = vld [vmem:[#allocation3 + $0x100] sm:$0xff]
    %v80 = vld [vmem:[#allocation3 + $0x108] sm:$0xff]
    %v81 = vld [vmem:[#allocation3 + $0x110] sm:$0xff]
    %v82 = vld [vmem:[#allocation3 + $0x118] sm:$0xff]
    %v83 = vld [vmem:[#allocation3 + $0x120] sm:$0xff]
    %v84 = vld [vmem:[#allocation3 + $0x128] sm:$0xff]
    %v85 = vld [vmem:[#allocation3 + $0x130] sm:$0xff]
    %v86 = vld [vmem:[#allocation3 + $0x138] sm:$0xff]
    %v87 = vld [vmem:[#allocation3 + $0x140] sm:$0xff]
    %v88 = vld [vmem:[#allocation3 + $0x148] sm:$0xff]
    %v89 = vld [vmem:[#allocation3 + $0x150] sm:$0xff]
    %v90 = vld [vmem:[#allocation3 + $0x158] sm:$0xff]
    %v91 = vld [vmem:[#allocation3 + $0x160] sm:$0xff]
    %v92 = vld [vmem:[#allocation3 + $0x168] sm:$0xff]
    %v93 = vld [vmem:[#allocation3 + $0x170] sm:$0xff]
    %v94 = vld [vmem:[#allocation3 + $0x178] sm:$0xff]
    %v95 = vld [vmem:[#allocation3 + $0x180] sm:$0xff]
    %v96 = vld [vmem:[#allocation3 + $0x188] sm:$0xff]
    %v97 = vld [vmem:[#allocation3 + $0x190] sm:$0xff]
    %v98 = vld [vmem:[#allocation3 + $0x198] sm:$0xff]
    %v99 = vld [vmem:[#allocation3 + $0x1a0] sm:$0xff]
    %v100 = vld [vmem:[#allocation3 + $0x1a8] sm:$0xff]
    %v101 = vld [vmem:[#allocation3 + $0x1b0] sm:$0xff]
    %v102 = vld [vmem:[#allocation3 + $0x1b8] sm:$0xff]
    %v103 = vld [vmem:[#allocation3 + $0x1c0] sm:$0xff]
    %v104 = vld [vmem:[#allocation3 + $0x1c8] sm:$0xff]
    %v105 = vld [vmem:[#allocation3 + $0x1d0] sm:$0xff]
    %v106 = vld [vmem:[#allocation3 + $0x1d8] sm:$0xff]
    %v107 = vld [vmem:[#allocation3 + $0x1e0] sm:$0xff]
    %v108 = vld [vmem:[#allocation3 + $0x1e8] sm:$0xff]
    %v109 = vld [vmem:[#allocation3 + $0x1f0] sm:$0xff]
    %v110 = vld [vmem:[#allocation3 + $0x1f8] sm:$0xff]
    %v111 = vld [vmem:[#allocation3 + $0x200] sm:$0xff]
    %v112 = vld [vmem:[#allocation3 + $0x208] sm:$0xff]
    %v113 = vld [vmem:[#allocation3 + $0x210] sm:$0xff]
    %v114 = vld [vmem:[#allocation3 + $0x218] sm:$0xff]
    %v115 = vld [vmem:[#allocation3 + $0x220] sm:$0xff]
    %v116 = vld [vmem:[#allocation3 + $0x228] sm:$0xff]
    %v117 = vld [vmem:[#allocation3 + $0x230] sm:$0xff]
    %v118 = vld [vmem:[#allocation3 + $0x238] sm:$0xff]
    %v119 = vld [vmem:[#allocation3 + $0x240] sm:$0xff]
    %v120 = vld [vmem:[#allocation3 + $0x248] sm:$0xff]
    %v121 = vld [vmem:[#allocation3 + $0x250] sm:$0xff]
    %v122 = vld [vmem:[#allocation3 + $0x258] sm:$0xff]
    %v123 = vld [vmem:[#allocation3 + $0x260] sm:$0xff]
    %v124 = vld [vmem:[#allocation3 + $0x268] sm:$0xff]
    %v125 = vld [vmem:[#allocation3 + $0x270] sm:$0xff]
    %v126 = vld [vmem:[#allocation3 + $0x278] sm:$0xff]
    %v127 = vld [vmem:[#allocation3 + $0x280] sm:$0xff]
    %v128 = vld [vmem:[#allocation3 + $0x288] sm:$0xff]
    %v129 = vld [vmem:[#allocation3 + $0x290] sm:$0xff]
    %v130 = vld [vmem:[#allocation3 + $0x298] sm:$0xff]
    %v131 = vld [vmem:[#allocation3 + $0x2a0] sm:$0xff]
    %v132 = vld [vmem:[#allocation3 + $0x2a8] sm:$0xff]
    %v133 = vld [vmem:[#allocation3 + $0x2b0] sm:$0xff]
    %v134 = vld [vmem:[#allocation3 + $0x2b8] sm:$0xff]
    %v135 = vld [vmem:[#allocation3 + $0x2c0] sm:$0xff]
    %v136 = vld [vmem:[#allocation3 + $0x2c8] sm:$0xff]
    %v137 = vld [vmem:[#allocation3 + $0x2d0] sm:$0xff]
    %v138 = vld [vmem:[#allocation3 + $0x2d8] sm:$0xff]
    %v139 = vld [vmem:[#allocation3 + $0x2e0] sm:$0xff]
    %v140 = vld [vmem:[#allocation3 + $0x2e8] sm:$0xff]
    %v141 = vld [vmem:[#allocation3 + $0x2f0] sm:$0xff]
    %v142 = vld [vmem:[#allocation3 + $0x2f8] sm:$0xff]
    %v143 = vld [vmem:[#allocation3 + $0x300] sm:$0xff]
    %v144 = vld [vmem:[#allocation3 + $0x308] sm:$0xff]
    %v145 = vld [vmem:[#allocation3 + $0x310] sm:$0xff]
    %v146 = vld [vmem:[#allocation3 + $0x318] sm:$0xff]
    %v147 = vld [vmem:[#allocation3 + $0x320] sm:$0xff]
    %v148 = vld [vmem:[#allocation3 + $0x328] sm:$0xff]
    %v149 = vld [vmem:[#allocation3 + $0x330] sm:$0xff]
    %v150 = vld [vmem:[#allocation3 + $0x338] sm:$0xff]
    %v151 = vld [vmem:[#allocation3 + $0x340] sm:$0xff]
    %v152 = vld [vmem:[#allocation3 + $0x348] sm:$0xff]
    %v153 = vld [vmem:[#allocation3 + $0x350] sm:$0xff]
    %v154 = vld [vmem:[#allocation3 + $0x358] sm:$0xff]
    %v155 = vld [vmem:[#allocation3 + $0x360] sm:$0xff]
    %v156 = vld [vmem:[#allocation3 + $0x368] sm:$0xff]
    %v157 = vld [vmem:[#allocation3 + $0x370] sm:$0xff]
    %v158 = vld [vmem:[#allocation3 + $0x378] sm:$0xff]
    %v159 = vld [vmem:[#allocation3 + $0x380] sm:$0xff]
    %v160 = vld [vmem:[#allocation3 + $0x388] sm:$0xff]
    %v161 = vld [vmem:[#allocation3 + $0x390] sm:$0xff]
    %v162 = vld [vmem:[#allocation3 + $0x398] sm:$0xff]
    %v163 = vld [vmem:[#allocation3 + $0x3a0] sm:$0xff]
    %v164 = vld [vmem:[#allocation3 + $0x3a8] sm:$0xff]
    %v165 = vld [vmem:[#allocation3 + $0x3b0] sm:$0xff]
    %v166 = vld [vmem:[#allocation3 + $0x3b8] sm:$0xff]
    %v167 = vld [vmem:[#allocation3 + $0x3c0] sm:$0xff]
    %v168 = vld [vmem:[#allocation3 + $0x3c8] sm:$0xff]
    %v169 = vld [vmem:[#allocation3 + $0x3d0] sm:$0xff]
    %v170 = vld [vmem:[#allocation3 + $0x3d8] sm:$0xff]
    %v171 = vld [vmem:[#allocation3 + $0x3e0] sm:$0xff]
    %v172 = vld [vmem:[#allocation3 + $0x3e8] sm:$0xff]
    %v173 = vld [vmem:[#allocation3 + $0x3f0] sm:$0xff]
    %v174 = vld [vmem:[#allocation3 + $0x3f8] sm:$0xff]
    %v175 = vld [vmem:[#allocation3 + $0x400] sm:$0xff]
    %v176 = vld [vmem:[#allocation3 + $0x408] sm:$0xff]
    %v177 = vld [vmem:[#allocation3 + $0x410] sm:$0xff]
    %v178 = vld [vmem:[#allocation3 + $0x418] sm:$0xff]
    %v179 = vld [vmem:[#allocation3 + $0x420] sm:$0xff]
    %v180 = vld [vmem:[#allocation3 + $0x428] sm:$0xff]
    %v181 = vld [vmem:[#allocation3 + $0x430] sm:$0xff]
    %v182 = vld [vmem:[#allocation3 + $0x438] sm:$0xff]
    %v183 = vld [vmem:[#allocation3 + $0x440] sm:$0xff]
    %v184 = vld [vmem:[#allocation3 + $0x448] sm:$0xff]
    %v185 = vld [vmem:[#allocation3 + $0x450] sm:$0xff]
    %v186 = vld [vmem:[#allocation3 + $0x458] sm:$0xff]
    %v187 = vld [vmem:[#allocation3 + $0x460] sm:$0xff]
    %v188 = vld [vmem:[#allocation3 + $0x468] sm:$0xff]
    %v189 = vld [vmem:[#allocation3 + $0x470] sm:$0xff]
    %v190 = vld [vmem:[#allocation3 + $0x478] sm:$0xff]
    %v191 = vld [vmem:[#allocation3 + $0x480] sm:$0xff]
    %v192 = vld [vmem:[#allocation3 + $0x488] sm:$0xff]
    %v193 = vld [vmem:[#allocation3 + $0x490] sm:$0xff]
    %v194 = vld [vmem:[#allocation3 + $0x498] sm:$0xff]
    %v195 = vld [vmem:[#allocation3 + $0x4a0] sm:$0xff]
    %v196 = vld [vmem:[#allocation3 + $0x4a8] sm:$0xff]
    %v197 = vld [vmem:[#allocation3 + $0x4b0] sm:$0xff]
    %v198 = vld [vmem:[#allocation3 + $0x4b8] sm:$0xff]
    %v199 = vld [vmem:[#allocation3 + $0x4c0] sm:$0xff]
    %v200 = vld [vmem:[#allocation3 + $0x4c8] sm:$0xff]
    %v201 = vld [vmem:[#allocation3 + $0x4d0] sm:$0xff]
    %v202 = vld [vmem:[#allocation3 + $0x4d8] sm:$0xff]
    %v203 = vld [vmem:[#allocation3 + $0x4e0] sm:$0xff]
    %v204 = vld [vmem:[#allocation3 + $0x4e8] sm:$0xff]
    %v205 = vld [vmem:[#allocation3 + $0x4f0] sm:$0xff]
    %v206 = vld [vmem:[#allocation3 + $0x4f8] sm:$0xff]
    %v207 = vld [vmem:[#allocation3 + $0x500] sm:$0xff]
    %v208 = vld [vmem:[#allocation3 + $0x508] sm:$0xff]
    %v209 = vld [vmem:[#allocation3 + $0x510] sm:$0xff]
    %v210 = vld [vmem:[#allocation3 + $0x518] sm:$0xff]
    %v211 = vld [vmem:[#allocation3 + $0x520] sm:$0xff]
    %v212 = vld [vmem:[#allocation3 + $0x528] sm:$0xff]
    %v213 = vld [vmem:[#allocation3 + $0x530] sm:$0xff]
    %v214 = vld [vmem:[#allocation3 + $0x538] sm:$0xff]
    %v215 = vld [vmem:[#allocation3 + $0x540] sm:$0xff]
    %v216 = vld [vmem:[#allocation3 + $0x548] sm:$0xff]
    %v217 = vld [vmem:[#allocation3 + $0x550] sm:$0xff]
    %v218 = vld [vmem:[#allocation3 + $0x558] sm:$0xff]
    %v219 = vld [vmem:[#allocation3 + $0x560] sm:$0xff]
    %v220 = vld [vmem:[#allocation3 + $0x568] sm:$0xff]
    %v221 = vld [vmem:[#allocation3 + $0x570] sm:$0xff]
    %v222 = vld [vmem:[#allocation3 + $0x578] sm:$0xff]
    %v223 = vld [vmem:[#allocation3 + $0x580] sm:$0xff]
    %v224 = vld [vmem:[#allocation3 + $0x588] sm:$0xff]
    %v225 = vld [vmem:[#allocation3 + $0x590] sm:$0xff]
    %v226 = vld [vmem:[#allocation3 + $0x598] sm:$0xff]
    %v227 = vld [vmem:[#allocation3 + $0x5a0] sm:$0xff]
    %v228 = vld [vmem:[#allocation3 + $0x5a8] sm:$0xff]
    %v229 = vld [vmem:[#allocation3 + $0x5b0] sm:$0xff]
    %v230 = vld [vmem:[#allocation3 + $0x5b8] sm:$0xff]
    %v231 = vld [vmem:[#allocation3 + $0x5c0] sm:$0xff]
    %v232 = vld [vmem:[#allocation3 + $0x5c8] sm:$0xff]
    %v233 = vld [vmem:[#allocation3 + $0x5d0] sm:$0xff]
    %v234 = vld [vmem:[#allocation3 + $0x5d8] sm:$0xff]
    %v235 = vld [vmem:[#allocation3 + $0x5e0] sm:$0xff]
    %v236 = vld [vmem:[#allocation3 + $0x5e8] sm:$0xff]
    %v237 = vld [vmem:[#allocation3 + $0x5f0] sm:$0xff]
    %v238 = vld [vmem:[#allocation3 + $0x5f8] sm:$0xff]
    %v239 = vld [vmem:[#allocation3 + $0x600] sm:$0xff]
    %v240 = vld [vmem:[#allocation3 + $0x608] sm:$0xff]
    %v241 = vld [vmem:[#allocation3 + $0x610] sm:$0xff]
    %v242 = vld [vmem:[#allocation3 + $0x618] sm:$0xff]
    %v243 = vld [vmem:[#allocation3 + $0x620] sm:$0xff]
    %v244 = vld [vmem:[#allocation3 + $0x628] sm:$0xff]
    %v245 = vld [vmem:[#allocation3 + $0x630] sm:$0xff]
    %v246 = vld [vmem:[#allocation3 + $0x638] sm:$0xff]
    %v247 = vld [vmem:[#allocation3 + $0x640] sm:$0xff]
    %v248 = vld [vmem:[#allocation3 + $0x648] sm:$0xff]
    %v249 = vld [vmem:[#allocation3 + $0x650] sm:$0xff]
    %v250 = vld [vmem:[#allocation3 + $0x658] sm:$0xff]
    %v251 = vld [vmem:[#allocation3 + $0x660] sm:$0xff]
    %v252 = vld [vmem:[#allocation3 + $0x668] sm:$0xff]
    %v253 = vld [vmem:[#allocation3 + $0x670] sm:$0xff]
    %v254 = vld [vmem:[#allocation3 + $0x678] sm:$0xff]
    %v255 = vld [vmem:[#allocation3 + $0x680] sm:$0xff]
    %v256 = vld [vmem:[#allocation3 + $0x688] sm:$0xff]
    %v257 = vld [vmem:[#allocation3 + $0x690] sm:$0xff]
    %v258 = vld [vmem:[#allocation3 + $0x698] sm:$0xff]
    %v259 = vld [vmem:[#allocation3 + $0x6a0] sm:$0xff]
    %v260 = vld [vmem:[#allocation3 + $0x6a8] sm:$0xff]
    %v261 = vld [vmem:[#allocation3 + $0x6b0] sm:$0xff]
    %v262 = vld [vmem:[#allocation3 + $0x6b8] sm:$0xff]
    %v263 = vld [vmem:[#allocation3 + $0x6c0] sm:$0xff]
    %v264 = vld [vmem:[#allocation3 + $0x6c8] sm:$0xff]
    %v265 = vld [vmem:[#allocation3 + $0x6d0] sm:$0xff]
    %v266 = vld [vmem:[#allocation3 + $0x6d8] sm:$0xff]
    %v267 = vld [vmem:[#allocation3 + $0x6e0] sm:$0xff]
    %v268 = vld [vmem:[#allocation3 + $0x6e8] sm:$0xff]
    %v269 = vld [vmem:[#allocation3 + $0x6f0] sm:$0xff]
    %v270 = vld [vmem:[#allocation3 + $0x6f8] sm:$0xff]
    %v271 = vld [vmem:[#allocation3 + $0x700] sm:$0xff]
    %v272 = vld [vmem:[#allocation3 + $0x708] sm:$0xff]
    %v273 = vld [vmem:[#allocation3 + $0x710] sm:$0xff]
    %v274 = vld [vmem:[#allocation3 + $0x718] sm:$0xff]
    %v275 = vld [vmem:[#allocation3 + $0x720] sm:$0xff]
    %v276 = vld [vmem:[#allocation3 + $0x728] sm:$0xff]
    %v277 = vld [vmem:[#allocation3 + $0x730] sm:$0xff]
    %v278 = vld [vmem:[#allocation3 + $0x738] sm:$0xff]
    %v279 = vld [vmem:[#allocation3 + $0x740] sm:$0xff]
    %v280 = vld [vmem:[#allocation3 + $0x748] sm:$0xff]
    %v281 = vld [vmem:[#allocation3 + $0x750] sm:$0xff]
    %v282 = vld [vmem:[#allocation3 + $0x758] sm:$0xff]
    %v283 = vld [vmem:[#allocation3 + $0x760] sm:$0xff]
    %v284 = vld [vmem:[#allocation3 + $0x768] sm:$0xff]
    %v285 = vld [vmem:[#allocation3 + $0x770] sm:$0xff]
    %v286 = vld [vmem:[#allocation3 + $0x778] sm:$0xff]
    %v287 = vld [vmem:[#allocation3 + $0x780] sm:$0xff]
    %v288 = vld [vmem:[#allocation3 + $0x788] sm:$0xff]
    %v289 = vld [vmem:[#allocation3 + $0x790] sm:$0xff]
    %v290 = vld [vmem:[#allocation3 + $0x798] sm:$0xff]
    %v291 = vld [vmem:[#allocation3 + $0x7a0] sm:$0xff]
    %v292 = vld [vmem:[#allocation3 + $0x7a8] sm:$0xff]
    %v293 = vld [vmem:[#allocation3 + $0x7b0] sm:$0xff]
    %v294 = vld [vmem:[#allocation3 + $0x7b8] sm:$0xff]
    %v295 = vld [vmem:[#allocation3 + $0x7c0] sm:$0xff]
    %v296 = vld [vmem:[#allocation3 + $0x7c8] sm:$0xff]
    %v297 = vld [vmem:[#allocation3 + $0x7d0] sm:$0xff]
    %v298 = vld [vmem:[#allocation3 + $0x7d8] sm:$0xff]
    %v299 = vld [vmem:[#allocation3 + $0x7e0] sm:$0xff]
    %v300 = vld [vmem:[#allocation3 + $0x7e8] sm:$0xff]
    %v301 = vld [vmem:[#allocation3 + $0x7f0] sm:$0xff]
    %v302 = vld [vmem:[#allocation3 + $0x7f8] sm:$0xff]
    %v307 = vunpack.c.l.b16 %v43
    %v308 = vunpack.c.h.b16 %v43
    %v309 = vunpack.c.l.b16 %v44
    %v310 = vunpack.c.h.b16 %v44
    %v311 = vunpack.c.l.b16 %v45
    %v312 = vunpack.c.h.b16 %v45
    %v313 = vunpack.c.l.b16 %v46
    %v314 = vunpack.c.h.b16 %v46
    %v315 = vpack.c.b16 %v307, %v307
    %v316 = vpack.c.b16 %v308, %v308
    %v317 = vpack.c.b16 %v309, %v309
    %v318 = vpack.c.b16 %v310, %v310
    %v319 = vpack.c.b16 %v311, %v311
    %v320 = vpack.c.b16 %v312, %v312
    %v321 = vpack.c.b16 %v313, %v313
    %v322 = vpack.c.b16 %v314, %v314
    %v587 = vunpack.c.l.b16 %v47
    %v588 = vunpack.c.h.b16 %v47
    %v589 = vunpack.c.l.b16 %v48
    %v590 = vunpack.c.h.b16 %v48
    %v591 = vunpack.c.l.b16 %v49
    %v592 = vunpack.c.h.b16 %v49
    %v593 = vunpack.c.l.b16 %v50
    %v594 = vunpack.c.h.b16 %v50
    %v595 = vunpack.c.l.b16 %v51
    %v596 = vunpack.c.h.b16 %v51
    %v597 = vunpack.c.l.b16 %v52
    %v598 = vunpack.c.h.b16 %v52
    %v599 = vunpack.c.l.b16 %v53
    %v600 = vunpack.c.h.b16 %v53
    %v601 = vunpack.c.l.b16 %v54
    %v602 = vunpack.c.h.b16 %v54
    %v603 = vunpack.c.l.b16 %v55
    %v604 = vunpack.c.h.b16 %v55
    %v605 = vunpack.c.l.b16 %v56
    %v606 = vunpack.c.h.b16 %v56
    %v607 = vunpack.c.l.b16 %v57
    %v608 = vunpack.c.h.b16 %v57
    %v609 = vunpack.c.l.b16 %v58
    %v610 = vunpack.c.h.b16 %v58
    %v611 = vunpack.c.l.b16 %v59
    %v612 = vunpack.c.h.b16 %v59
    %v613 = vunpack.c.l.b16 %v60
    %v614 = vunpack.c.h.b16 %v60
    %v615 = vunpack.c.l.b16 %v61
    %v616 = vunpack.c.h.b16 %v61
    %v617 = vunpack.c.l.b16 %v62
    %v618 = vunpack.c.h.b16 %v62
    %v619 = vunpack.c.l.b16 %v63
    %v620 = vunpack.c.h.b16 %v63
    %v621 = vunpack.c.l.b16 %v64
    %v622 = vunpack.c.h.b16 %v64
    %v623 = vunpack.c.l.b16 %v65
    %v624 = vunpack.c.h.b16 %v65
    %v625 = vunpack.c.l.b16 %v66
    %v626 = vunpack.c.h.b16 %v66
    %v627 = vunpack.c.l.b16 %v67
    %v628 = vunpack.c.h.b16 %v67
    %v629 = vunpack.c.l.b16 %v68
    %v630 = vunpack.c.h.b16 %v68
    %v631 = vunpack.c.l.b16 %v69
    %v632 = vunpack.c.h.b16 %v69
    %v633 = vunpack.c.l.b16 %v70
    %v634 = vunpack.c.h.b16 %v70
    %v635 = vunpack.c.l.b16 %v71
    %v636 = vunpack.c.h.b16 %v71
    %v637 = vunpack.c.l.b16 %v72
    %v638 = vunpack.c.h.b16 %v72
    %v639 = vunpack.c.l.b16 %v73
    %v640 = vunpack.c.h.b16 %v73
    %v641 = vunpack.c.l.b16 %v74
    %v642 = vunpack.c.h.b16 %v74
    %v643 = vunpack.c.l.b16 %v75
    %v644 = vunpack.c.h.b16 %v75
    %v645 = vunpack.c.l.b16 %v76
    %v646 = vunpack.c.h.b16 %v76
    %v647 = vunpack.c.l.b16 %v77
    %v648 = vunpack.c.h.b16 %v77
    %v649 = vunpack.c.l.b16 %v78
    %v650 = vunpack.c.h.b16 %v78
    %v651 = vunpack.c.l.b16 %v79
    %v652 = vunpack.c.h.b16 %v79
    %v653 = vunpack.c.l.b16 %v80
    %v654 = vunpack.c.h.b16 %v80
    %v655 = vunpack.c.l.b16 %v81
    %v656 = vunpack.c.h.b16 %v81
    %v657 = vunpack.c.l.b16 %v82
    %v658 = vunpack.c.h.b16 %v82
    %v659 = vunpack.c.l.b16 %v83
    %v660 = vunpack.c.h.b16 %v83
    %v661 = vunpack.c.l.b16 %v84
    %v662 = vunpack.c.h.b16 %v84
    %v663 = vunpack.c.l.b16 %v85
    %v664 = vunpack.c.h.b16 %v85
    %v665 = vunpack.c.l.b16 %v86
    %v666 = vunpack.c.h.b16 %v86
    %v667 = vunpack.c.l.b16 %v87
    %v668 = vunpack.c.h.b16 %v87
    %v669 = vunpack.c.l.b16 %v88
    %v670 = vunpack.c.h.b16 %v88
    %v671 = vunpack.c.l.b16 %v89
    %v672 = vunpack.c.h.b16 %v89
    %v673 = vunpack.c.l.b16 %v90
    %v674 = vunpack.c.h.b16 %v90
    %v675 = vunpack.c.l.b16 %v91
    %v676 = vunpack.c.h.b16 %v91
    %v677 = vunpack.c.l.b16 %v92
    %v678 = vunpack.c.h.b16 %v92
    %v679 = vunpack.c.l.b16 %v93
    %v680 = vunpack.c.h.b16 %v93
    %v681 = vunpack.c.l.b16 %v94
    %v682 = vunpack.c.h.b16 %v94
    %v683 = vunpack.c.l.b16 %v95
    %v684 = vunpack.c.h.b16 %v95
    %v685 = vunpack.c.l.b16 %v96
    %v686 = vunpack.c.h.b16 %v96
    %v687 = vunpack.c.l.b16 %v97
    %v688 = vunpack.c.h.b16 %v97
    %v689 = vunpack.c.l.b16 %v98
    %v690 = vunpack.c.h.b16 %v98
    %v691 = vunpack.c.l.b16 %v99
    %v692 = vunpack.c.h.b16 %v99
    %v693 = vunpack.c.l.b16 %v100
    %v694 = vunpack.c.h.b16 %v100
    %v695 = vunpack.c.l.b16 %v101
    %v696 = vunpack.c.h.b16 %v101
    %v697 = vunpack.c.l.b16 %v102
    %v698 = vunpack.c.h.b16 %v102
    %v699 = vunpack.c.l.b16 %v103
    %v700 = vunpack.c.h.b16 %v103
    %v701 = vunpack.c.l.b16 %v104
    %v702 = vunpack.c.h.b16 %v104
    %v703 = vunpack.c.l.b16 %v105
    %v704 = vunpack.c.h.b16 %v105
    %v705 = vunpack.c.l.b16 %v106
    %v706 = vunpack.c.h.b16 %v106
    %v707 = vunpack.c.l.b16 %v107
    %v708 = vunpack.c.h.b16 %v107
    %v709 = vunpack.c.l.b16 %v108
    %v710 = vunpack.c.h.b16 %v108
    %v711 = vunpack.c.l.b16 %v109
    %v712 = vunpack.c.h.b16 %v109
    %v713 = vunpack.c.l.b16 %v110
    %v714 = vunpack.c.h.b16 %v110
    %v715 = vunpack.c.l.b16 %v111
    %v716 = vunpack.c.h.b16 %v111
    %v717 = vunpack.c.l.b16 %v112
    %v718 = vunpack.c.h.b16 %v112
    %v719 = vunpack.c.l.b16 %v113
    %v720 = vunpack.c.h.b16 %v113
    %v721 = vunpack.c.l.b16 %v114
    %v722 = vunpack.c.h.b16 %v114
    %v723 = vunpack.c.l.b16 %v115
    %v724 = vunpack.c.h.b16 %v115
    %v725 = vunpack.c.l.b16 %v116
    %v726 = vunpack.c.h.b16 %v116
    %v727 = vunpack.c.l.b16 %v117
    %v728 = vunpack.c.h.b16 %v117
    %v729 = vunpack.c.l.b16 %v118
    %v730 = vunpack.c.h.b16 %v118
    %v731 = vunpack.c.l.b16 %v119
    %v732 = vunpack.c.h.b16 %v119
    %v733 = vunpack.c.l.b16 %v120
    %v734 = vunpack.c.h.b16 %v120
    %v735 = vunpack.c.l.b16 %v121
    %v736 = vunpack.c.h.b16 %v121
    %v737 = vunpack.c.l.b16 %v122
    %v738 = vunpack.c.h.b16 %v122
    %v739 = vunpack.c.l.b16 %v123
    %v740 = vunpack.c.h.b16 %v123
    %v741 = vunpack.c.l.b16 %v124
    %v742 = vunpack.c.h.b16 %v124
    %v743 = vunpack.c.l.b16 %v125
    %v744 = vunpack.c.h.b16 %v125
    %v745 = vunpack.c.l.b16 %v126
    %v746 = vunpack.c.h.b16 %v126
    %v747 = vunpack.c.l.b16 %v127
    %v748 = vunpack.c.h.b16 %v127
    %v749 = vunpack.c.l.b16 %v128
    %v750 = vunpack.c.h.b16 %v128
    %v751 = vunpack.c.l.b16 %v129
    %v752 = vunpack.c.h.b16 %v129
    %v753 = vunpack.c.l.b16 %v130
    %v754 = vunpack.c.h.b16 %v130
    %v755 = vunpack.c.l.b16 %v131
    %v756 = vunpack.c.h.b16 %v131
    %v757 = vunpack.c.l.b16 %v132
    %v758 = vunpack.c.h.b16 %v132
    %v759 = vunpack.c.l.b16 %v133
    %v760 = vunpack.c.h.b16 %v133
    %v761 = vunpack.c.l.b16 %v134
    %v762 = vunpack.c.h.b16 %v134
    %v763 = vunpack.c.l.b16 %v135
    %v764 = vunpack.c.h.b16 %v135
    %v765 = vunpack.c.l.b16 %v136
    %v766 = vunpack.c.h.b16 %v136
    %v767 = vunpack.c.l.b16 %v137
    %v768 = vunpack.c.h.b16 %v137
    %v769 = vunpack.c.l.b16 %v138
    %v770 = vunpack.c.h.b16 %v138
    %v771 = vunpack.c.l.b16 %v139
    %v772 = vunpack.c.h.b16 %v139
    %v773 = vunpack.c.l.b16 %v140
    %v774 = vunpack.c.h.b16 %v140
    %v775 = vunpack.c.l.b16 %v141
    %v776 = vunpack.c.h.b16 %v141
    %v777 = vunpack.c.l.b16 %v142
    %v778 = vunpack.c.h.b16 %v142
    %v779 = vunpack.c.l.b16 %v143
    %v780 = vunpack.c.h.b16 %v143
    %v781 = vunpack.c.l.b16 %v144
    %v782 = vunpack.c.h.b16 %v144
    %v783 = vunpack.c.l.b16 %v145
    %v784 = vunpack.c.h.b16 %v145
    %v785 = vunpack.c.l.b16 %v146
    %v786 = vunpack.c.h.b16 %v146
    %v787 = vunpack.c.l.b16 %v147
    %v788 = vunpack.c.h.b16 %v147
    %v789 = vunpack.c.l.b16 %v148
    %v790 = vunpack.c.h.b16 %v148
    %v791 = vunpack.c.l.b16 %v149
    %v792 = vunpack.c.h.b16 %v149
    %v793 = vunpack.c.l.b16 %v150
    %v794 = vunpack.c.h.b16 %v150
    %v795 = vunpack.c.l.b16 %v151
    %v796 = vunpack.c.h.b16 %v151
    %v797 = vunpack.c.l.b16 %v152
    %v798 = vunpack.c.h.b16 %v152
    %v799 = vunpack.c.l.b16 %v153
    %v800 = vunpack.c.h.b16 %v153
    %v801 = vunpack.c.l.b16 %v154
    %v802 = vunpack.c.h.b16 %v154
    %v803 = vunpack.c.l.b16 %v155
    %v804 = vunpack.c.h.b16 %v155
    %v805 = vunpack.c.l.b16 %v156
    %v806 = vunpack.c.h.b16 %v156
    %v807 = vunpack.c.l.b16 %v157
    %v808 = vunpack.c.h.b16 %v157
    %v809 = vunpack.c.l.b16 %v158
    %v810 = vunpack.c.h.b16 %v158
    %v811 = vunpack.c.l.b16 %v159
    %v812 = vunpack.c.h.b16 %v159
    %v813 = vunpack.c.l.b16 %v160
    %v814 = vunpack.c.h.b16 %v160
    %v815 = vunpack.c.l.b16 %v161
    %v816 = vunpack.c.h.b16 %v161
    %v817 = vunpack.c.l.b16 %v162
    %v818 = vunpack.c.h.b16 %v162
    %v819 = vunpack.c.l.b16 %v163
    %v820 = vunpack.c.h.b16 %v163
    %v821 = vunpack.c.l.b16 %v164
    %v822 = vunpack.c.h.b16 %v164
    %v823 = vunpack.c.l.b16 %v165
    %v824 = vunpack.c.h.b16 %v165
    %v825 = vunpack.c.l.b16 %v166
    %v826 = vunpack.c.h.b16 %v166
    %v827 = vunpack.c.l.b16 %v167
    %v828 = vunpack.c.h.b16 %v167
    %v829 = vunpack.c.l.b16 %v168
    %v830 = vunpack.c.h.b16 %v168
    %v831 = vunpack.c.l.b16 %v169
    %v832 = vunpack.c.h.b16 %v169
    %v833 = vunpack.c.l.b16 %v170
    %v834 = vunpack.c.h.b16 %v170
    %v835 = vunpack.c.l.b16 %v171
    %v836 = vunpack.c.h.b16 %v171
    %v837 = vunpack.c.l.b16 %v172
    %v838 = vunpack.c.h.b16 %v172
    %v839 = vunpack.c.l.b16 %v173
    %v840 = vunpack.c.h.b16 %v173
    %v841 = vunpack.c.l.b16 %v174
    %v842 = vunpack.c.h.b16 %v174
    %v843 = vunpack.c.l.b16 %v175
    %v844 = vunpack.c.h.b16 %v175
    %v845 = vunpack.c.l.b16 %v176
    %v846 = vunpack.c.h.b16 %v176
    %v847 = vunpack.c.l.b16 %v177
    %v848 = vunpack.c.h.b16 %v177
    %v849 = vunpack.c.l.b16 %v178
    %v850 = vunpack.c.h.b16 %v178
    %v851 = vunpack.c.l.b16 %v179
    %v852 = vunpack.c.h.b16 %v179
    %v853 = vunpack.c.l.b16 %v180
    %v854 = vunpack.c.h.b16 %v180
    %v855 = vunpack.c.l.b16 %v181
    %v856 = vunpack.c.h.b16 %v181
    %v857 = vunpack.c.l.b16 %v182
    %v858 = vunpack.c.h.b16 %v182
    %v859 = vunpack.c.l.b16 %v183
    %v860 = vunpack.c.h.b16 %v183
    %v861 = vunpack.c.l.b16 %v184
    %v862 = vunpack.c.h.b16 %v184
    %v863 = vunpack.c.l.b16 %v185
    %v864 = vunpack.c.h.b16 %v185
    %v865 = vunpack.c.l.b16 %v186
    %v866 = vunpack.c.h.b16 %v186
    %v867 = vunpack.c.l.b16 %v187
    %v868 = vunpack.c.h.b16 %v187
    %v869 = vunpack.c.l.b16 %v188
    %v870 = vunpack.c.h.b16 %v188
    %v871 = vunpack.c.l.b16 %v189
    %v872 = vunpack.c.h.b16 %v189
    %v873 = vunpack.c.l.b16 %v190
    %v874 = vunpack.c.h.b16 %v190
    %v875 = vunpack.c.l.b16 %v191
    %v876 = vunpack.c.h.b16 %v191
    %v877 = vunpack.c.l.b16 %v192
    %v878 = vunpack.c.h.b16 %v192
    %v879 = vunpack.c.l.b16 %v193
    %v880 = vunpack.c.h.b16 %v193
    %v881 = vunpack.c.l.b16 %v194
    %v882 = vunpack.c.h.b16 %v194
    %v883 = vunpack.c.l.b16 %v195
    %v884 = vunpack.c.h.b16 %v195
    %v885 = vunpack.c.l.b16 %v196
    %v886 = vunpack.c.h.b16 %v196
    %v887 = vunpack.c.l.b16 %v197
    %v888 = vunpack.c.h.b16 %v197
    %v889 = vunpack.c.l.b16 %v198
    %v890 = vunpack.c.h.b16 %v198
    %v891 = vunpack.c.l.b16 %v199
    %v892 = vunpack.c.h.b16 %v199
    %v893 = vunpack.c.l.b16 %v200
    %v894 = vunpack.c.h.b16 %v200
    %v895 = vunpack.c.l.b16 %v201
    %v896 = vunpack.c.h.b16 %v201
    %v897 = vunpack.c.l.b16 %v202
    %v898 = vunpack.c.h.b16 %v202
    %v899 = vunpack.c.l.b16 %v203
    %v900 = vunpack.c.h.b16 %v203
    %v901 = vunpack.c.l.b16 %v204
    %v902 = vunpack.c.h.b16 %v204
    %v903 = vunpack.c.l.b16 %v205
    %v904 = vunpack.c.h.b16 %v205
    %v905 = vunpack.c.l.b16 %v206
    %v906 = vunpack.c.h.b16 %v206
    %v907 = vunpack.c.l.b16 %v207
    %v908 = vunpack.c.h.b16 %v207
    %v909 = vunpack.c.l.b16 %v208
    %v910 = vunpack.c.h.b16 %v208
    %v911 = vunpack.c.l.b16 %v209
    %v912 = vunpack.c.h.b16 %v209
    %v913 = vunpack.c.l.b16 %v210
    %v914 = vunpack.c.h.b16 %v210
    %v915 = vunpack.c.l.b16 %v211
    %v916 = vunpack.c.h.b16 %v211
    %v917 = vunpack.c.l.b16 %v212
    %v918 = vunpack.c.h.b16 %v212
    %v919 = vunpack.c.l.b16 %v213
    %v920 = vunpack.c.h.b16 %v213
    %v921 = vunpack.c.l.b16 %v214
    %v922 = vunpack.c.h.b16 %v214
    %v923 = vunpack.c.l.b16 %v215
    %v924 = vunpack.c.h.b16 %v215
    %v925 = vunpack.c.l.b16 %v216
    %v926 = vunpack.c.h.b16 %v216
    %v927 = vunpack.c.l.b16 %v217
    %v928 = vunpack.c.h.b16 %v217
    %v929 = vunpack.c.l.b16 %v218
    %v930 = vunpack.c.h.b16 %v218
    %v931 = vunpack.c.l.b16 %v219
    %v932 = vunpack.c.h.b16 %v219
    %v933 = vunpack.c.l.b16 %v220
    %v934 = vunpack.c.h.b16 %v220
    %v935 = vunpack.c.l.b16 %v221
    %v936 = vunpack.c.h.b16 %v221
    %v937 = vunpack.c.l.b16 %v222
    %v938 = vunpack.c.h.b16 %v222
    %v939 = vunpack.c.l.b16 %v223
    %v940 = vunpack.c.h.b16 %v223
    %v941 = vunpack.c.l.b16 %v224
    %v942 = vunpack.c.h.b16 %v224
    %v943 = vunpack.c.l.b16 %v225
    %v944 = vunpack.c.h.b16 %v225
    %v945 = vunpack.c.l.b16 %v226
    %v946 = vunpack.c.h.b16 %v226
    %v947 = vunpack.c.l.b16 %v227
    %v948 = vunpack.c.h.b16 %v227
    %v949 = vunpack.c.l.b16 %v228
    %v950 = vunpack.c.h.b16 %v228
    %v951 = vunpack.c.l.b16 %v229
    %v952 = vunpack.c.h.b16 %v229
    %v953 = vunpack.c.l.b16 %v230
    %v954 = vunpack.c.h.b16 %v230
    %v955 = vunpack.c.l.b16 %v231
    %v956 = vunpack.c.h.b16 %v231
    %v957 = vunpack.c.l.b16 %v232
    %v958 = vunpack.c.h.b16 %v232
    %v959 = vunpack.c.l.b16 %v233
    %v960 = vunpack.c.h.b16 %v233
    %v961 = vunpack.c.l.b16 %v234
    %v962 = vunpack.c.h.b16 %v234
    %v963 = vunpack.c.l.b16 %v235
    %v964 = vunpack.c.h.b16 %v235
    %v965 = vunpack.c.l.b16 %v236
    %v966 = vunpack.c.h.b16 %v236
    %v967 = vunpack.c.l.b16 %v237
    %v968 = vunpack.c.h.b16 %v237
    %v969 = vunpack.c.l.b16 %v238
    %v970 = vunpack.c.h.b16 %v238
    %v971 = vunpack.c.l.b16 %v239
    %v972 = vunpack.c.h.b16 %v239
    %v973 = vunpack.c.l.b16 %v240
    %v974 = vunpack.c.h.b16 %v240
    %v975 = vunpack.c.l.b16 %v241
    %v976 = vunpack.c.h.b16 %v241
    %v977 = vunpack.c.l.b16 %v242
    %v978 = vunpack.c.h.b16 %v242
    %v979 = vunpack.c.l.b16 %v243
    %v980 = vunpack.c.h.b16 %v243
    %v981 = vunpack.c.l.b16 %v244
    %v982 = vunpack.c.h.b16 %v244
    %v983 = vunpack.c.l.b16 %v245
    %v984 = vunpack.c.h.b16 %v245
    %v985 = vunpack.c.l.b16 %v246
    %v986 = vunpack.c.h.b16 %v246
    %v987 = vunpack.c.l.b16 %v247
    %v988 = vunpack.c.h.b16 %v247
    %v989 = vunpack.c.l.b16 %v248
    %v990 = vunpack.c.h.b16 %v248
    %v991 = vunpack.c.l.b16 %v249
    %v992 = vunpack.c.h.b16 %v249
    %v993 = vunpack.c.l.b16 %v250
    %v994 = vunpack.c.h.b16 %v250
    %v995 = vunpack.c.l.b16 %v251
    %v996 = vunpack.c.h.b16 %v251
    %v997 = vunpack.c.l.b16 %v252
    %v998 = vunpack.c.h.b16 %v252
    %v999 = vunpack.c.l.b16 %v253
    %v1000 = vunpack.c.h.b16 %v253
    %v1001 = vunpack.c.l.b16 %v254
    %v1002 = vunpack.c.h.b16 %v254
    %v1003 = vunpack.c.l.b16 %v255
    %v1004 = vunpack.c.h.b16 %v255
    %v1005 = vunpack.c.l.b16 %v256
    %v1006 = vunpack.c.h.b16 %v256
    %v1007 = vunpack.c.l.b16 %v257
    %v1008 = vunpack.c.h.b16 %v257
    %v1009 = vunpack.c.l.b16 %v258
    %v1010 = vunpack.c.h.b16 %v258
    %v1011 = vunpack.c.l.b16 %v259
    %v1012 = vunpack.c.h.b16 %v259
    %v1013 = vunpack.c.l.b16 %v260
    %v1014 = vunpack.c.h.b16 %v260
    %v1015 = vunpack.c.l.b16 %v261
    %v1016 = vunpack.c.h.b16 %v261
    %v1017 = vunpack.c.l.b16 %v262
    %v1018 = vunpack.c.h.b16 %v262
    %v1019 = vunpack.c.l.b16 %v263
    %v1020 = vunpack.c.h.b16 %v263
    %v1021 = vunpack.c.l.b16 %v264
    %v1022 = vunpack.c.h.b16 %v264
    %v1023 = vunpack.c.l.b16 %v265
    %v1024 = vunpack.c.h.b16 %v265
    %v1025 = vunpack.c.l.b16 %v266
    %v1026 = vunpack.c.h.b16 %v266
    %v1027 = vunpack.c.l.b16 %v267
    %v1028 = vunpack.c.h.b16 %v267
    %v1029 = vunpack.c.l.b16 %v268
    %v1030 = vunpack.c.h.b16 %v268
    %v1031 = vunpack.c.l.b16 %v269
    %v1032 = vunpack.c.h.b16 %v269
    %v1033 = vunpack.c.l.b16 %v270
    %v1034 = vunpack.c.h.b16 %v270
    %v1035 = vunpack.c.l.b16 %v271
    %v1036 = vunpack.c.h.b16 %v271
    %v1037 = vunpack.c.l.b16 %v272
    %v1038 = vunpack.c.h.b16 %v272
    %v1039 = vunpack.c.l.b16 %v273
    %v1040 = vunpack.c.h.b16 %v273
    %v1041 = vunpack.c.l.b16 %v274
    %v1042 = vunpack.c.h.b16 %v274
    %v1043 = vunpack.c.l.b16 %v275
    %v1044 = vunpack.c.h.b16 %v275
    %v1045 = vunpack.c.l.b16 %v276
    %v1046 = vunpack.c.h.b16 %v276
    %v1047 = vunpack.c.l.b16 %v277
    %v1048 = vunpack.c.h.b16 %v277
    %v1049 = vunpack.c.l.b16 %v278
    %v1050 = vunpack.c.h.b16 %v278
    %v1051 = vunpack.c.l.b16 %v279
    %v1052 = vunpack.c.h.b16 %v279
    %v1053 = vunpack.c.l.b16 %v280
    %v1054 = vunpack.c.h.b16 %v280
    %v1055 = vunpack.c.l.b16 %v281
    %v1056 = vunpack.c.h.b16 %v281
    %v1057 = vunpack.c.l.b16 %v282
    %v1058 = vunpack.c.h.b16 %v282
    %v1059 = vunpack.c.l.b16 %v283
    %v1060 = vunpack.c.h.b16 %v283
    %v1061 = vunpack.c.l.b16 %v284
    %v1062 = vunpack.c.h.b16 %v284
    %v1063 = vunpack.c.l.b16 %v285
    %v1064 = vunpack.c.h.b16 %v285
    %v1065 = vunpack.c.l.b16 %v286
    %v1066 = vunpack.c.h.b16 %v286
    %v1067 = vunpack.c.l.b16 %v287
    %v1068 = vunpack.c.h.b16 %v287
    %v1069 = vunpack.c.l.b16 %v288
    %v1070 = vunpack.c.h.b16 %v288
    %v1071 = vunpack.c.l.b16 %v289
    %v1072 = vunpack.c.h.b16 %v289
    %v1073 = vunpack.c.l.b16 %v290
    %v1074 = vunpack.c.h.b16 %v290
    %v1075 = vunpack.c.l.b16 %v291
    %v1076 = vunpack.c.h.b16 %v291
    %v1077 = vunpack.c.l.b16 %v292
    %v1078 = vunpack.c.h.b16 %v292
    %v1079 = vunpack.c.l.b16 %v293
    %v1080 = vunpack.c.h.b16 %v293
    %v1081 = vunpack.c.l.b16 %v294
    %v1082 = vunpack.c.h.b16 %v294
    %v1083 = vunpack.c.l.b16 %v295
    %v1084 = vunpack.c.h.b16 %v295
    %v1085 = vunpack.c.l.b16 %v296
    %v1086 = vunpack.c.h.b16 %v296
    %v1087 = vunpack.c.l.b16 %v297
    %v1088 = vunpack.c.h.b16 %v297
    %v1089 = vunpack.c.l.b16 %v298
    %v1090 = vunpack.c.h.b16 %v298
    %v1091 = vunpack.c.l.b16 %v299
    %v1092 = vunpack.c.h.b16 %v299
    %v1093 = vunpack.c.l.b16 %v300
    %v1094 = vunpack.c.h.b16 %v300
    %v1095 = vunpack.c.l.b16 %v301
    %v1096 = vunpack.c.h.b16 %v301
    %v1097 = vunpack.c.l.b16 %v302
    %v1098 = vunpack.c.h.b16 %v302
    %v1099 = vpack.c.b16 %v591, %v587
    %v1100 = vpack.c.b16 %v592, %v588
    %v1101 = vpack.c.b16 %v593, %v589
    %v1102 = vpack.c.b16 %v594, %v590
    %v1103 = vpack.c.b16 %v599, %v595
    %v1104 = vpack.c.b16 %v600, %v596
    %v1105 = vpack.c.b16 %v601, %v597
    %v1106 = vpack.c.b16 %v602, %v598
    %v1107 = vpack.c.b16 %v607, %v603
    %v1108 = vpack.c.b16 %v608, %v604
    %v1109 = vpack.c.b16 %v609, %v605
    %v1110 = vpack.c.b16 %v610, %v606
    %v1111 = vpack.c.b16 %v615, %v611
    %v1112 = vpack.c.b16 %v616, %v612
    %v1113 = vpack.c.b16 %v617, %v613
    %v1114 = vpack.c.b16 %v618, %v614
    %v1115 = vpack.c.b16 %v623, %v619
    %v1116 = vpack.c.b16 %v624, %v620
    %v1117 = vpack.c.b16 %v625, %v621
    %v1118 = vpack.c.b16 %v626, %v622
    %v1119 = vpack.c.b16 %v631, %v627
    %v1120 = vpack.c.b16 %v632, %v628
    %v1121 = vpack.c.b16 %v633, %v629
    %v1122 = vpack.c.b16 %v634, %v630
    %v1123 = vpack.c.b16 %v639, %v635
    %v1124 = vpack.c.b16 %v640, %v636
    %v1125 = vpack.c.b16 %v641, %v637
    %v1126 = vpack.c.b16 %v642, %v638
    %v1127 = vpack.c.b16 %v647, %v643
    %v1128 = vpack.c.b16 %v648, %v644
    %v1129 = vpack.c.b16 %v649, %v645
    %v1130 = vpack.c.b16 %v650, %v646
    %v1131 = vpack.c.b16 %v655, %v651
    %v1132 = vpack.c.b16 %v656, %v652
    %v1133 = vpack.c.b16 %v657, %v653
    %v1134 = vpack.c.b16 %v658, %v654
    %v1135 = vpack.c.b16 %v663, %v659
    %v1136 = vpack.c.b16 %v664, %v660
    %v1137 = vpack.c.b16 %v665, %v661
    %v1138 = vpack.c.b16 %v666, %v662
    %v1139 = vpack.c.b16 %v671, %v667
    %v1140 = vpack.c.b16 %v672, %v668
    %v1141 = vpack.c.b16 %v673, %v669
    %v1142 = vpack.c.b16 %v674, %v670
    %v1143 = vpack.c.b16 %v679, %v675
    %v1144 = vpack.c.b16 %v680, %v676
    %v1145 = vpack.c.b16 %v681, %v677
    %v1146 = vpack.c.b16 %v682, %v678
    %v1147 = vpack.c.b16 %v687, %v683
    %v1148 = vpack.c.b16 %v688, %v684
    %v1149 = vpack.c.b16 %v689, %v685
    %v1150 = vpack.c.b16 %v690, %v686
    %v1151 = vpack.c.b16 %v695, %v691
    %v1152 = vpack.c.b16 %v696, %v692
    %v1153 = vpack.c.b16 %v697, %v693
    %v1154 = vpack.c.b16 %v698, %v694
    %v1155 = vpack.c.b16 %v703, %v699
    %v1156 = vpack.c.b16 %v704, %v700
    %v1157 = vpack.c.b16 %v705, %v701
    %v1158 = vpack.c.b16 %v706, %v702
    %v1159 = vpack.c.b16 %v711, %v707
    %v1160 = vpack.c.b16 %v712, %v708
    %v1161 = vpack.c.b16 %v713, %v709
    %v1162 = vpack.c.b16 %v714, %v710
    %v1163 = vpack.c.b16 %v719, %v715
    %v1164 = vpack.c.b16 %v720, %v716
    %v1165 = vpack.c.b16 %v721, %v717
    %v1166 = vpack.c.b16 %v722, %v718
    %v1167 = vpack.c.b16 %v727, %v723
    %v1168 = vpack.c.b16 %v728, %v724
    %v1169 = vpack.c.b16 %v729, %v725
    %v1170 = vpack.c.b16 %v730, %v726
    %v1171 = vpack.c.b16 %v735, %v731
    %v1172 = vpack.c.b16 %v736, %v732
    %v1173 = vpack.c.b16 %v737, %v733
    %v1174 = vpack.c.b16 %v738, %v734
    %v1175 = vpack.c.b16 %v743, %v739
    %v1176 = vpack.c.b16 %v744, %v740
    %v1177 = vpack.c.b16 %v745, %v741
    %v1178 = vpack.c.b16 %v746, %v742
    %v1179 = vpack.c.b16 %v751, %v747
    %v1180 = vpack.c.b16 %v752, %v748
    %v1181 = vpack.c.b16 %v753, %v749
    %v1182 = vpack.c.b16 %v754, %v750
    %v1183 = vpack.c.b16 %v759, %v755
    %v1184 = vpack.c.b16 %v760, %v756
    %v1185 = vpack.c.b16 %v761, %v757
    %v1186 = vpack.c.b16 %v762, %v758
    %v1187 = vpack.c.b16 %v767, %v763
    %v1188 = vpack.c.b16 %v768, %v764
    %v1189 = vpack.c.b16 %v769, %v765
    %v1190 = vpack.c.b16 %v770, %v766
    %v1191 = vpack.c.b16 %v775, %v771
    %v1192 = vpack.c.b16 %v776, %v772
    %v1193 = vpack.c.b16 %v777, %v773
    %v1194 = vpack.c.b16 %v778, %v774
    %v1195 = vpack.c.b16 %v783, %v779
    %v1196 = vpack.c.b16 %v784, %v780
    %v1197 = vpack.c.b16 %v785, %v781
    %v1198 = vpack.c.b16 %v786, %v782
    %v1199 = vpack.c.b16 %v791, %v787
    %v1200 = vpack.c.b16 %v792, %v788
    %v1201 = vpack.c.b16 %v793, %v789
    %v1202 = vpack.c.b16 %v794, %v790
    %v1203 = vpack.c.b16 %v799, %v795
    %v1204 = vpack.c.b16 %v800, %v796
    %v1205 = vpack.c.b16 %v801, %v797
    %v1206 = vpack.c.b16 %v802, %v798
    %v1207 = vpack.c.b16 %v807, %v803
    %v1208 = vpack.c.b16 %v808, %v804
    %v1209 = vpack.c.b16 %v809, %v805
    %v1210 = vpack.c.b16 %v810, %v806
    %v1211 = vpack.c.b16 %v815, %v811
    %v1212 = vpack.c.b16 %v816, %v812
    %v1213 = vpack.c.b16 %v817, %v813
    %v1214 = vpack.c.b16 %v818, %v814
    %v1215 = vpack.c.b16 %v823, %v819
    %v1216 = vpack.c.b16 %v824, %v820
    %v1217 = vpack.c.b16 %v825, %v821
    %v1218 = vpack.c.b16 %v826, %v822
    %v1219 = vpack.c.b16 %v831, %v827
    %v1220 = vpack.c.b16 %v832, %v828
    %v1221 = vpack.c.b16 %v833, %v829
    %v1222 = vpack.c.b16 %v834, %v830
    %v1223 = vpack.c.b16 %v839, %v835
    %v1224 = vpack.c.b16 %v840, %v836
    %v1225 = vpack.c.b16 %v841, %v837
    %v1226 = vpack.c.b16 %v842, %v838
    %v1227 = vpack.c.b16 %v847, %v843
    %v1228 = vpack.c.b16 %v848, %v844
    %v1229 = vpack.c.b16 %v849, %v845
    %v1230 = vpack.c.b16 %v850, %v846
    %v1231 = vpack.c.b16 %v855, %v851
    %v1232 = vpack.c.b16 %v856, %v852
    %v1233 = vpack.c.b16 %v857, %v853
    %v1234 = vpack.c.b16 %v858, %v854
    %v1235 = vpack.c.b16 %v863, %v859
    %v1236 = vpack.c.b16 %v864, %v860
    %v1237 = vpack.c.b16 %v865, %v861
    %v1238 = vpack.c.b16 %v866, %v862
    %v1239 = vpack.c.b16 %v871, %v867
    %v1240 = vpack.c.b16 %v872, %v868
    %v1241 = vpack.c.b16 %v873, %v869
    %v1242 = vpack.c.b16 %v874, %v870
    %v1243 = vpack.c.b16 %v879, %v875
    %v1244 = vpack.c.b16 %v880, %v876
    %v1245 = vpack.c.b16 %v881, %v877
    %v1246 = vpack.c.b16 %v882, %v878
    %v1247 = vpack.c.b16 %v887, %v883
    %v1248 = vpack.c.b16 %v888, %v884
    %v1249 = vpack.c.b16 %v889, %v885
    %v1250 = vpack.c.b16 %v890, %v886
    %v1251 = vpack.c.b16 %v895, %v891
    %v1252 = vpack.c.b16 %v896, %v892
    %v1253 = vpack.c.b16 %v897, %v893
    %v1254 = vpack.c.b16 %v898, %v894
    %v1255 = vpack.c.b16 %v903, %v899
    %v1256 = vpack.c.b16 %v904, %v900
    %v1257 = vpack.c.b16 %v905, %v901
    %v1258 = vpack.c.b16 %v906, %v902
    %v1259 = vpack.c.b16 %v911, %v907
    %v1260 = vpack.c.b16 %v912, %v908
    %v1261 = vpack.c.b16 %v913, %v909
    %v1262 = vpack.c.b16 %v914, %v910
    %v1263 = vpack.c.b16 %v919, %v915
    %v1264 = vpack.c.b16 %v920, %v916
    %v1265 = vpack.c.b16 %v921, %v917
    %v1266 = vpack.c.b16 %v922, %v918
    %v1267 = vpack.c.b16 %v927, %v923
    %v1268 = vpack.c.b16 %v928, %v924
    %v1269 = vpack.c.b16 %v929, %v925
    %v1270 = vpack.c.b16 %v930, %v926
    %v1271 = vpack.c.b16 %v935, %v931
    %v1272 = vpack.c.b16 %v936, %v932
    %v1273 = vpack.c.b16 %v937, %v933
    %v1274 = vpack.c.b16 %v938, %v934
    %v1275 = vpack.c.b16 %v943, %v939
    %v1276 = vpack.c.b16 %v944, %v940
    %v1277 = vpack.c.b16 %v945, %v941
    %v1278 = vpack.c.b16 %v946, %v942
    %v1279 = vpack.c.b16 %v951, %v947
    %v1280 = vpack.c.b16 %v952, %v948
    %v1281 = vpack.c.b16 %v953, %v949
    %v1282 = vpack.c.b16 %v954, %v950
    %v1283 = vpack.c.b16 %v959, %v955
    %v1284 = vpack.c.b16 %v960, %v956
    %v1285 = vpack.c.b16 %v961, %v957
    %v1286 = vpack.c.b16 %v962, %v958
    %v1287 = vpack.c.b16 %v967, %v963
    %v1288 = vpack.c.b16 %v968, %v964
    %v1289 = vpack.c.b16 %v969, %v965
    %v1290 = vpack.c.b16 %v970, %v966
    %v1291 = vpack.c.b16 %v975, %v971
    %v1292 = vpack.c.b16 %v976, %v972
    %v1293 = vpack.c.b16 %v977, %v973
    %v1294 = vpack.c.b16 %v978, %v974
    %v1295 = vpack.c.b16 %v983, %v979
    %v1296 = vpack.c.b16 %v984, %v980
    %v1297 = vpack.c.b16 %v985, %v981
    %v1298 = vpack.c.b16 %v986, %v982
    %v1299 = vpack.c.b16 %v991, %v987
    %v1300 = vpack.c.b16 %v992, %v988
    %v1301 = vpack.c.b16 %v993, %v989
    %v1302 = vpack.c.b16 %v994, %v990
    %v1303 = vpack.c.b16 %v999, %v995
    %v1304 = vpack.c.b16 %v1000, %v996
    %v1305 = vpack.c.b16 %v1001, %v997
    %v1306 = vpack.c.b16 %v1002, %v998
    %v1307 = vpack.c.b16 %v1007, %v1003
    %v1308 = vpack.c.b16 %v1008, %v1004
    %v1309 = vpack.c.b16 %v1009, %v1005
    %v1310 = vpack.c.b16 %v1010, %v1006
    %v1311 = vpack.c.b16 %v1015, %v1011
    %v1312 = vpack.c.b16 %v1016, %v1012
    %v1313 = vpack.c.b16 %v1017, %v1013
    %v1314 = vpack.c.b16 %v1018, %v1014
    %v1315 = vpack.c.b16 %v1023, %v1019
    %v1316 = vpack.c.b16 %v1024, %v1020
    %v1317 = vpack.c.b16 %v1025, %v1021
    %v1318 = vpack.c.b16 %v1026, %v1022
    %v1319 = vpack.c.b16 %v1031, %v1027
    %v1320 = vpack.c.b16 %v1032, %v1028
    %v1321 = vpack.c.b16 %v1033, %v1029
    %v1322 = vpack.c.b16 %v1034, %v1030
    %v1323 = vpack.c.b16 %v1039, %v1035
    %v1324 = vpack.c.b16 %v1040, %v1036
    %v1325 = vpack.c.b16 %v1041, %v1037
    %v1326 = vpack.c.b16 %v1042, %v1038
    %v1327 = vpack.c.b16 %v1047, %v1043
    %v1328 = vpack.c.b16 %v1048, %v1044
    %v1329 = vpack.c.b16 %v1049, %v1045
    %v1330 = vpack.c.b16 %v1050, %v1046
    %v1331 = vpack.c.b16 %v1055, %v1051
    %v1332 = vpack.c.b16 %v1056, %v1052
    %v1333 = vpack.c.b16 %v1057, %v1053
    %v1334 = vpack.c.b16 %v1058, %v1054
    %v1335 = vpack.c.b16 %v1063, %v1059
    %v1336 = vpack.c.b16 %v1064, %v1060
    %v1337 = vpack.c.b16 %v1065, %v1061
    %v1338 = vpack.c.b16 %v1066, %v1062
    %v1339 = vpack.c.b16 %v1071, %v1067
    %v1340 = vpack.c.b16 %v1072, %v1068
    %v1341 = vpack.c.b16 %v1073, %v1069
    %v1342 = vpack.c.b16 %v1074, %v1070
    %v1343 = vpack.c.b16 %v1079, %v1075
    %v1344 = vpack.c.b16 %v1080, %v1076
    %v1345 = vpack.c.b16 %v1081, %v1077
    %v1346 = vpack.c.b16 %v1082, %v1078
    %v1347 = vpack.c.b16 %v1087, %v1083
    %v1348 = vpack.c.b16 %v1088, %v1084
    %v1349 = vpack.c.b16 %v1089, %v1085
    %v1350 = vpack.c.b16 %v1090, %v1086
    %v1351 = vpack.c.b16 %v1095, %v1091
    %v1352 = vpack.c.b16 %v1096, %v1092
    %v1353 = vpack.c.b16 %v1097, %v1093
    %v1354 = vpack.c.b16 %v1098, %v1094
    %1611 = vmatprep.subr.bf16.mxu0 %v1128
    %1612 = vmatpush1.bf16.msra.mxu0 %v1127
    %1613 = vmatprep.subr.bf16.mxu0 %v1124
    %1614 = vmatpush1.bf16.msra.mxu0 %v1123
    %1615 = vmatprep.subr.bf16.mxu0 %v1120
    %1616 = vmatpush1.bf16.msra.mxu0 %v1119
    %1617 = vmatprep.subr.bf16.mxu0 %v1116
    %1618 = vmatpush1.bf16.msra.mxu0 %v1115
    %1619 = vmatprep.subr.bf16.mxu0 %v1112
    %1620 = vmatpush1.bf16.msra.mxu0 %v1111
    %1621 = vmatprep.subr.bf16.mxu0 %v1108
    %1622 = vmatpush1.bf16.msra.mxu0 %v1107
    %1623 = vmatprep.subr.bf16.mxu0 %v1104
    %1624 = vmatpush1.bf16.msra.mxu0 %v1103
    %1625 = vmatprep.subr.bf16.mxu0 %v1100
    %1626 = vmatpush1.bf16.msra.mxu0 %v1099
    %1627 = vmatprep.subr.bf16.mxu0 %v1160
    %1628 = vmatpush2.bf16.msra.mxu0 %v1159
    %1629 = vmatprep.subr.bf16.mxu0 %v1156
    %1630 = vmatpush2.bf16.msra.mxu0 %v1155
    %1631 = vmatprep.subr.bf16.mxu0 %v1152
    %1632 = vmatpush2.bf16.msra.mxu0 %v1151
    %1633 = vmatprep.subr.bf16.mxu0 %v1148
    %1634 = vmatpush2.bf16.msra.mxu0 %v1147
    %1635 = vmatprep.subr.bf16.mxu0 %v1144
    %1636 = vmatpush2.bf16.msra.mxu0 %v1143
    %1637 = vmatprep.subr.bf16.mxu0 %v1140
    %1638 = vmatpush2.bf16.msra.mxu0 %v1139
    %1639 = vmatprep.subr.bf16.mxu0 %v1136
    %1640 = vmatpush2.bf16.msra.mxu0 %v1135
    %1641 = vmatprep.subr.bf16.mxu0 %v1132
    %1642 = vmatpush2.bf16.msra.mxu0 %v1131
    %1643 = vmatprep.mubr.bf16.mxu0 %v316
    %1644 = vmatmul.mubr.bf16.gmra.mxu0 %v315
    %v1645 = vpop.f32.mrf.mxu0
    %v1646 = vadd.f32 0.0, %v1645
    %v1647 = vpop.f32.mrf.mxu0
    %v1648 = vadd.f32 0.0, %v1647
    %v1649 = vpop.f32.mrf.mxu0
    %v1650 = vpop.f32.mrf.mxu0
    %1651 = vdwg.mxu0
    %1652 = vmatprep.subr.bf16.mxu0 %v1192
    %1653 = vmatpush1.bf16.msra.mxu0 %v1191
    %1654 = vmatprep.subr.bf16.mxu0 %v1188
    %1655 = vmatpush1.bf16.msra.mxu0 %v1187
    %1656 = vmatprep.subr.bf16.mxu0 %v1184
    %1657 = vmatpush1.bf16.msra.mxu0 %v1183
    %1658 = vmatprep.subr.bf16.mxu0 %v1180
    %1659 = vmatpush1.bf16.msra.mxu0 %v1179
    %1660 = vmatprep.subr.bf16.mxu0 %v1176
    %1661 = vmatpush1.bf16.msra.mxu0 %v1175
    %1662 = vmatprep.subr.bf16.mxu0 %v1172
    %1663 = vmatpush1.bf16.msra.mxu0 %v1171
    %1664 = vmatprep.subr.bf16.mxu0 %v1168
    %1665 = vmatpush1.bf16.msra.mxu0 %v1167
    %1666 = vmatprep.subr.bf16.mxu0 %v1164
    %1667 = vmatpush1.bf16.msra.mxu0 %v1163
    %1668 = vmatprep.subr.bf16.mxu0 %v1224
    %1669 = vmatpush2.bf16.msra.mxu0 %v1223
    %1670 = vmatprep.subr.bf16.mxu0 %v1220
    %1671 = vmatpush2.bf16.msra.mxu0 %v1219
    %1672 = vmatprep.subr.bf16.mxu0 %v1216
    %1673 = vmatpush2.bf16.msra.mxu0 %v1215
    %1674 = vmatprep.subr.bf16.mxu0 %v1212
    %1675 = vmatpush2.bf16.msra.mxu0 %v1211
    %1676 = vmatprep.subr.bf16.mxu0 %v1208
    %1677 = vmatpush2.bf16.msra.mxu0 %v1207
    %1678 = vmatprep.subr.bf16.mxu0 %v1204
    %1679 = vmatpush2.bf16.msra.mxu0 %v1203
    %1680 = vmatprep.subr.bf16.mxu0 %v1200
    %1681 = vmatpush2.bf16.msra.mxu0 %v1199
    %1682 = vmatprep.subr.bf16.mxu0 %v1196
    %1683 = vmatpush2.bf16.msra.mxu0 %v1195
    %1684 = vmatprep.mubr.bf16.mxu0 %v318
    %1685 = vmatmul.mubr.bf16.gmra.mxu0 %v317
    %v1686 = vpop.f32.mrf.mxu0
    %v1687 = vadd.f32 %v1646, %v1686
    %v1688 = vpop.f32.mrf.mxu0
    %v1689 = vadd.f32 %v1648, %v1688
    %v1690 = vpop.f32.mrf.mxu0
    %v1691 = vpop.f32.mrf.mxu0
    %1692 = vdwg.mxu0
    %1693 = vmatprep.subr.bf16.mxu0 %v1256
    %1694 = vmatpush1.bf16.msra.mxu0 %v1255
    %1695 = vmatprep.subr.bf16.mxu0 %v1252
    %1696 = vmatpush1.bf16.msra.mxu0 %v1251
    %1697 = vmatprep.subr.bf16.mxu0 %v1248
    %1698 = vmatpush1.bf16.msra.mxu0 %v1247
    %1699 = vmatprep.subr.bf16.mxu0 %v1244
    %1700 = vmatpush1.bf16.msra.mxu0 %v1243
    %1701 = vmatprep.subr.bf16.mxu0 %v1240
    %1702 = vmatpush1.bf16.msra.mxu0 %v1239
    %1703 = vmatprep.subr.bf16.mxu0 %v1236
    %1704 = vmatpush1.bf16.msra.mxu0 %v1235
    %1705 = vmatprep.subr.bf16.mxu0 %v1232
    %1706 = vmatpush1.bf16.msra.mxu0 %v1231
    %1707 = vmatprep.subr.bf16.mxu0 %v1228
    %1708 = vmatpush1.bf16.msra.mxu0 %v1227
    %1709 = vmatprep.subr.bf16.mxu0 %v1288
    %1710 = vmatpush2.bf16.msra.mxu0 %v1287
    %1711 = vmatprep.subr.bf16.mxu0 %v1284
    %1712 = vmatpush2.bf16.msra.mxu0 %v1283
    %1713 = vmatprep.subr.bf16.mxu0 %v1280
    %1714 = vmatpush2.bf16.msra.mxu0 %v1279
    %1715 = vmatprep.subr.bf16.mxu0 %v1276
    %1716 = vmatpush2.bf16.msra.mxu0 %v1275
    %1717 = vmatprep.subr.bf16.mxu0 %v1272
    %1718 = vmatpush2.bf16.msra.mxu0 %v1271
    %1719 = vmatprep.subr.bf16.mxu0 %v1268
    %1720 = vmatpush2.bf16.msra.mxu0 %v1267
    %1721 = vmatprep.subr.bf16.mxu0 %v1264
    %1722 = vmatpush2.bf16.msra.mxu0 %v1263
    %1723 = vmatprep.subr.bf16.mxu0 %v1260
    %1724 = vmatpush2.bf16.msra.mxu0 %v1259
    %1725 = vmatprep.mubr.bf16.mxu0 %v320
    %1726 = vmatmul.mubr.bf16.gmra.mxu0 %v319
    %v1727 = vpop.f32.mrf.mxu0
    %v1728 = vadd.f32 %v1687, %v1727
    %v1729 = vpop.f32.mrf.mxu0
    %v1730 = vadd.f32 %v1689, %v1729
    %v1731 = vpop.f32.mrf.mxu0
    %v1732 = vpop.f32.mrf.mxu0
    %1733 = vdwg.mxu0
    %1734 = vmatprep.subr.bf16.mxu0 %v1320
    %1735 = vmatpush1.bf16.msra.mxu0 %v1319
    %1736 = vmatprep.subr.bf16.mxu0 %v1316
    %1737 = vmatpush1.bf16.msra.mxu0 %v1315
    %1738 = vmatprep.subr.bf16.mxu0 %v1312
    %1739 = vmatpush1.bf16.msra.mxu0 %v1311
    %1740 = vmatprep.subr.bf16.mxu0 %v1308
    %1741 = vmatpush1.bf16.msra.mxu0 %v1307
    %1742 = vmatprep.subr.bf16.mxu0 %v1304
    %1743 = vmatpush1.bf16.msra.mxu0 %v1303
    %1744 = vmatprep.subr.bf16.mxu0 %v1300
    %1745 = vmatpush1.bf16.msra.mxu0 %v1299
    %1746 = vmatprep.subr.bf16.mxu0 %v1296
    %1747 = vmatpush1.bf16.msra.mxu0 %v1295
    %1748 = vmatprep.subr.bf16.mxu0 %v1292
    %1749 = vmatpush1.bf16.msra.mxu0 %v1291
    %1750 = vmatprep.subr.bf16.mxu0 %v1352
    %1751 = vmatpush2.bf16.msra.mxu0 %v1351
    %1752 = vmatprep.subr.bf16.mxu0 %v1348
    %1753 = vmatpush2.bf16.msra.mxu0 %v1347
    %1754 = vmatprep.subr.bf16.mxu0 %v1344
    %1755 = vmatpush2.bf16.msra.mxu0 %v1343
    %1756 = vmatprep.subr.bf16.mxu0 %v1340
    %1757 = vmatpush2.bf16.msra.mxu0 %v1339
    %1758 = vmatprep.subr.bf16.mxu0 %v1336
    %1759 = vmatpush2.bf16.msra.mxu0 %v1335
    %1760 = vmatprep.subr.bf16.mxu0 %v1332
    %1761 = vmatpush2.bf16.msra.mxu0 %v1331
    %1762 = vmatprep.subr.bf16.mxu0 %v1328
    %1763 = vmatpush2.bf16.msra.mxu0 %v1327
    %1764 = vmatprep.subr.bf16.mxu0 %v1324
    %1765 = vmatpush2.bf16.msra.mxu0 %v1323
    %1766 = vmatprep.mubr.bf16.mxu0 %v322
    %1767 = vmatmul.mubr.bf16.gmra.mxu0 %v321
    %v1768 = vpop.f32.mrf.mxu0
    %v1769 = vadd.f32 %v1728, %v1768
    %v1770 = vpop.f32.mrf.mxu0
    %v1771 = vadd.f32 %v1730, %v1770
    %v1772 = vpop.f32.mrf.mxu0
    %v1773 = vpop.f32.mrf.mxu0
    %1774 = vdwg.mxu0
    %1775 = vmatprep.subr.bf16.mxu0 %v1130
    %1776 = vmatpush1.bf16.msra.mxu0 %v1129
    %1777 = vmatprep.subr.bf16.mxu0 %v1126
    %1778 = vmatpush1.bf16.msra.mxu0 %v1125
    %1779 = vmatprep.subr.bf16.mxu0 %v1122
    %1780 = vmatpush1.bf16.msra.mxu0 %v1121
    %1781 = vmatprep.subr.bf16.mxu0 %v1118
    %1782 = vmatpush1.bf16.msra.mxu0 %v1117
    %1783 = vmatprep.subr.bf16.mxu0 %v1114
    %1784 = vmatpush1.bf16.msra.mxu0 %v1113
    %1785 = vmatprep.subr.bf16.mxu0 %v1110
    %1786 = vmatpush1.bf16.msra.mxu0 %v1109
    %1787 = vmatprep.subr.bf16.mxu0 %v1106
    %1788 = vmatpush1.bf16.msra.mxu0 %v1105
    %1789 = vmatprep.subr.bf16.mxu0 %v1102
    %1790 = vmatpush1.bf16.msra.mxu0 %v1101
    %1791 = vmatprep.subr.bf16.mxu0 %v1162
    %1792 = vmatpush2.bf16.msra.mxu0 %v1161
    %1793 = vmatprep.subr.bf16.mxu0 %v1158
    %1794 = vmatpush2.bf16.msra.mxu0 %v1157
    %1795 = vmatprep.subr.bf16.mxu0 %v1154
    %1796 = vmatpush2.bf16.msra.mxu0 %v1153
    %1797 = vmatprep.subr.bf16.mxu0 %v1150
    %1798 = vmatpush2.bf16.msra.mxu0 %v1149
    %1799 = vmatprep.subr.bf16.mxu0 %v1146
    %1800 = vmatpush2.bf16.msra.mxu0 %v1145
    %1801 = vmatprep.subr.bf16.mxu0 %v1142
    %1802 = vmatpush2.bf16.msra.mxu0 %v1141
    %1803 = vmatprep.subr.bf16.mxu0 %v1138
    %1804 = vmatpush2.bf16.msra.mxu0 %v1137
    %1805 = vmatprep.subr.bf16.mxu0 %v1134
    %1806 = vmatpush2.bf16.msra.mxu0 %v1133
    %1807 = vmatprep.mubr.bf16.mxu0 %v316
    %1808 = vmatmul.mubr.bf16.gmra.mxu0 %v315
    %v1809 = vpop.f32.mrf.mxu0
    %v1810 = vadd.f32 0.0, %v1809
    %v1811 = vpop.f32.mrf.mxu0
    %v1812 = vadd.f32 0.0, %v1811
    %v1813 = vpop.f32.mrf.mxu0
    %v1814 = vpop.f32.mrf.mxu0
    %1815 = vdwg.mxu0
    %1816 = vmatprep.subr.bf16.mxu0 %v1194
    %1817 = vmatpush1.bf16.msra.mxu0 %v1193
    %1818 = vmatprep.subr.bf16.mxu0 %v1190
    %1819 = vmatpush1.bf16.msra.mxu0 %v1189
    %1820 = vmatprep.subr.bf16.mxu0 %v1186
    %1821 = vmatpush1.bf16.msra.mxu0 %v1185
    %1822 = vmatprep.subr.bf16.mxu0 %v1182
    %1823 = vmatpush1.bf16.msra.mxu0 %v1181
    %1824 = vmatprep.subr.bf16.mxu0 %v1178
    %1825 = vmatpush1.bf16.msra.mxu0 %v1177
    %1826 = vmatprep.subr.bf16.mxu0 %v1174
    %1827 = vmatpush1.bf16.msra.mxu0 %v1173
    %1828 = vmatprep.subr.bf16.mxu0 %v1170
    %1829 = vmatpush1.bf16.msra.mxu0 %v1169
    %1830 = vmatprep.subr.bf16.mxu0 %v1166
    %1831 = vmatpush1.bf16.msra.mxu0 %v1165
    %1832 = vmatprep.subr.bf16.mxu0 %v1226
    %1833 = vmatpush2.bf16.msra.mxu0 %v1225
    %1834 = vmatprep.subr.bf16.mxu0 %v1222
    %1835 = vmatpush2.bf16.msra.mxu0 %v1221
    %1836 = vmatprep.subr.bf16.mxu0 %v1218
    %1837 = vmatpush2.bf16.msra.mxu0 %v1217
    %1838 = vmatprep.subr.bf16.mxu0 %v1214
    %1839 = vmatpush2.bf16.msra.mxu0 %v1213
    %1840 = vmatprep.subr.bf16.mxu0 %v1210
    %1841 = vmatpush2.bf16.msra.mxu0 %v1209
    %1842 = vmatprep.subr.bf16.mxu0 %v1206
    %1843 = vmatpush2.bf16.msra.mxu0 %v1205
    %1844 = vmatprep.subr.bf16.mxu0 %v1202
    %1845 = vmatpush2.bf16.msra.mxu0 %v1201
    %1846 = vmatprep.subr.bf16.mxu0 %v1198
    %1847 = vmatpush2.bf16.msra.mxu0 %v1197
    %1848 = vmatprep.mubr.bf16.mxu0 %v318
    %1849 = vmatmul.mubr.bf16.gmra.mxu0 %v317
    %v1850 = vpop.f32.mrf.mxu0
    %v1851 = vadd.f32 %v1810, %v1850
    %v1852 = vpop.f32.mrf.mxu0
    %v1853 = vadd.f32 %v1812, %v1852
    %v1854 = vpop.f32.mrf.mxu0
    %v1855 = vpop.f32.mrf.mxu0
    %1856 = vdwg.mxu0
    %1857 = vmatprep.subr.bf16.mxu0 %v1258
    %1858 = vmatpush1.bf16.msra.mxu0 %v1257
    %1859 = vmatprep.subr.bf16.mxu0 %v1254
    %1860 = vmatpush1.bf16.msra.mxu0 %v1253
    %1861 = vmatprep.subr.bf16.mxu0 %v1250
    %1862 = vmatpush1.bf16.msra.mxu0 %v1249
    %1863 = vmatprep.subr.bf16.mxu0 %v1246
    %1864 = vmatpush1.bf16.msra.mxu0 %v1245
    %1865 = vmatprep.subr.bf16.mxu0 %v1242
    %1866 = vmatpush1.bf16.msra.mxu0 %v1241
    %1867 = vmatprep.subr.bf16.mxu0 %v1238
    %1868 = vmatpush1.bf16.msra.mxu0 %v1237
    %1869 = vmatprep.subr.bf16.mxu0 %v1234
    %1870 = vmatpush1.bf16.msra.mxu0 %v1233
    %1871 = vmatprep.subr.bf16.mxu0 %v1230
    %1872 = vmatpush1.bf16.msra.mxu0 %v1229
    %1873 = vmatprep.subr.bf16.mxu0 %v1290
    %1874 = vmatpush2.bf16.msra.mxu0 %v1289
    %1875 = vmatprep.subr.bf16.mxu0 %v1286
    %1876 = vmatpush2.bf16.msra.mxu0 %v1285
    %1877 = vmatprep.subr.bf16.mxu0 %v1282
    %1878 = vmatpush2.bf16.msra.mxu0 %v1281
    %1879 = vmatprep.subr.bf16.mxu0 %v1278
    %1880 = vmatpush2.bf16.msra.mxu0 %v1277
    %1881 = vmatprep.subr.bf16.mxu0 %v1274
    %1882 = vmatpush2.bf16.msra.mxu0 %v1273
    %1883 = vmatprep.subr.bf16.mxu0 %v1270
    %1884 = vmatpush2.bf16.msra.mxu0 %v1269
    %1885 = vmatprep.subr.bf16.mxu0 %v1266
    %1886 = vmatpush2.bf16.msra.mxu0 %v1265
    %1887 = vmatprep.subr.bf16.mxu0 %v1262
    %1888 = vmatpush2.bf16.msra.mxu0 %v1261
    %1889 = vmatprep.mubr.bf16.mxu0 %v320
    %1890 = vmatmul.mubr.bf16.gmra.mxu0 %v319
    %v1891 = vpop.f32.mrf.mxu0
    %v1892 = vadd.f32 %v1851, %v1891
    %v1893 = vpop.f32.mrf.mxu0
    %v1894 = vadd.f32 %v1853, %v1893
    %v1895 = vpop.f32.mrf.mxu0
    %v1896 = vpop.f32.mrf.mxu0
    %1897 = vdwg.mxu0
    %1898 = vmatprep.subr.bf16.mxu0 %v1322
    %1899 = vmatpush1.bf16.msra.mxu0 %v1321
    %1900 = vmatprep.subr.bf16.mxu0 %v1318
    %1901 = vmatpush1.bf16.msra.mxu0 %v1317
    %1902 = vmatprep.subr.bf16.mxu0 %v1314
    %1903 = vmatpush1.bf16.msra.mxu0 %v1313
    %1904 = vmatprep.subr.bf16.mxu0 %v1310
    %1905 = vmatpush1.bf16.msra.mxu0 %v1309
    %1906 = vmatprep.subr.bf16.mxu0 %v1306
    %1907 = vmatpush1.bf16.msra.mxu0 %v1305
    %1908 = vmatprep.subr.bf16.mxu0 %v1302
    %1909 = vmatpush1.bf16.msra.mxu0 %v1301
    %1910 = vmatprep.subr.bf16.mxu0 %v1298
    %1911 = vmatpush1.bf16.msra.mxu0 %v1297
    %1912 = vmatprep.subr.bf16.mxu0 %v1294
    %1913 = vmatpush1.bf16.msra.mxu0 %v1293
    %1914 = vmatprep.subr.bf16.mxu0 %v1354
    %1915 = vmatpush2.bf16.msra.mxu0 %v1353
    %1916 = vmatprep.subr.bf16.mxu0 %v1350
    %1917 = vmatpush2.bf16.msra.mxu0 %v1349
    %1918 = vmatprep.subr.bf16.mxu0 %v1346
    %1919 = vmatpush2.bf16.msra.mxu0 %v1345
    %1920 = vmatprep.subr.bf16.mxu0 %v1342
    %1921 = vmatpush2.bf16.msra.mxu0 %v1341
    %1922 = vmatprep.subr.bf16.mxu0 %v1338
    %1923 = vmatpush2.bf16.msra.mxu0 %v1337
    %1924 = vmatprep.subr.bf16.mxu0 %v1334
    %1925 = vmatpush2.bf16.msra.mxu0 %v1333
    %1926 = vmatprep.subr.bf16.mxu0 %v1330
    %1927 = vmatpush2.bf16.msra.mxu0 %v1329
    %1928 = vmatprep.subr.bf16.mxu0 %v1326
    %1929 = vmatpush2.bf16.msra.mxu0 %v1325
    %1930 = vmatprep.mubr.bf16.mxu0 %v322
    %1931 = vmatmul.mubr.bf16.gmra.mxu0 %v321
    %v1932 = vpop.f32.mrf.mxu0
    %v1933 = vadd.f32 %v1892, %v1932
    %v1934 = vpop.f32.mrf.mxu0
    %v1935 = vadd.f32 %v1894, %v1934
    %v1936 = vpop.f32.mrf.mxu0
    %v1937 = vpop.f32.mrf.mxu0
    %1938 = vdwg.mxu0
    %v1939 = vadd.f32 %v39, %v1769
    %v1940 = vadd.f32 %v40, %v1771
    %v1941 = vadd.f32 %v41, %v1933
    %v1942 = vadd.f32 %v42, %v1935
    %1943 = vst [vmem:[#allocation2] sm:$0xff] %v1939
    %1944 = vst [vmem:[#allocation2 + $0x8] sm:$0xff] %v1940
    %1945 = vst [vmem:[#allocation2 + $0x10] sm:$0xff] %v1941
    %1946 = vst [vmem:[#allocation2 + $0x18] sm:$0xff] %v1942
    // Predicated region
    $region26: #{energy_regressor_forward.3} parent=1 // pred_check
      %p1947 = pneg %p31
    $region27: #{energy_regressor_forward.3} parent=1 // pred_check_branch
      %1949 = sbr.rel (%p1947) target = $region29
    $region28: #{energy_regressor_forward.3} parent=1 // pred_region
      %v1950 = vld [vmem:[#allocation2] sm:$0xff]
      %v1951 = vld [vmem:[#allocation2 + $0x8] sm:$0xff]
      %v1952 = vld [vmem:[#allocation2 + $0x10] sm:$0xff]
      %v1953 = vld [vmem:[#allocation2 + $0x18] sm:$0xff]
      %v1954 = vld [vmem:[%s2] sm:$0xf]
      %v1956 = vlaneseq
      %v1957 = vshrl.u32 %v1956, 7
      %v1958 = vsub.s32 0, %v1957
      %v1959 = vrot.slane %v1954, %v1958
      %v1960 = vlaneseq
      %v1961 = vshrl.u32 %v1960, 7
      %v1962 = vsub.s32 1, %v1961
      %v1963 = vrot.slane %v1954, %v1962
      %v1964 = vlaneseq
      %v1965 = vshrl.u32 %v1964, 7
      %v1966 = vsub.s32 2, %v1965
      %v1967 = vrot.slane %v1954, %v1966
      %v1968 = vlaneseq
      %v1969 = vshrl.u32 %v1968, 7
      %v1970 = vsub.s32 3, %v1969
      %v1971 = vrot.slane %v1954, %v1970
      %v1976 = vmul.f32 %v1950, %v1959
      %v1977 = vmul.f32 %v1951, %v1963
      %v1978 = vmul.f32 %v1952, %v1967
      %v1979 = vmul.f32 %v1953, %v1971
      %v1980 = vld [vmem:[%s3] sm:$0xf]
      %v1982 = vlaneseq
      %v1983 = vshrl.u32 %v1982, 7
      %v1984 = vsub.s32 0, %v1983
      %v1985 = vrot.slane %v1980, %v1984
      %v1986 = vlaneseq
      %v1987 = vshrl.u32 %v1986, 7
      %v1988 = vsub.s32 1, %v1987
      %v1989 = vrot.slane %v1980, %v1988
      %v1990 = vlaneseq
      %v1991 = vshrl.u32 %v1990, 7
      %v1992 = vsub.s32 2, %v1991
      %v1993 = vrot.slane %v1980, %v1992
      %v1994 = vlaneseq
      %v1995 = vshrl.u32 %v1994, 7
      %v1996 = vsub.s32 3, %v1995
      %v1997 = vrot.slane %v1980, %v1996
      %v2002 = vadd.f32 %v1976, %v1985
      %v2003 = vadd.f32 %v1977, %v1989
      %v2004 = vadd.f32 %v1978, %v1993
      %v2005 = vadd.f32 %v1979, %v1997
      %vm2006 = vcmp.ge.f32.partialorder %v2002, 0.0
      %vm2007 = vcmp.ge.f32.partialorder %v2003, 0.0
      %vm2008 = vcmp.ge.f32.partialorder %v2004, 0.0
      %vm2009 = vcmp.ge.f32.partialorder %v2005, 0.0
      %v2010 = vmul.f32 %v2002, 0.2
      %v2011 = vmul.f32 %v2003, 0.2
      %v2012 = vmul.f32 %v2004, 0.2
      %v2013 = vmul.f32 %v2005, 0.2
      %v2014 = vsel %vm2006, %v2002, %v2010
      %v2015 = vsel %vm2007, %v2003, %v2011
      %v2016 = vsel %vm2008, %v2004, %v2012
      %v2017 = vsel %vm2009, %v2005, %v2013
      %v2018 = vpack.c.bf16 %v2014, %v2014
      %v2019 = vpack.c.bf16 %v2015, %v2015
      %v2020 = vpack.c.bf16 %v2016, %v2016
      %v2021 = vpack.c.bf16 %v2017, %v2017
      %v2026 = vunpack.c.l.b16 %v2018
      %v2027 = vunpack.c.l.b16 %v2019
      %v2028 = vunpack.c.l.b16 %v2020
      %v2029 = vunpack.c.l.b16 %v2021
      %v2030 = vpack.c.b16 %v2027, %v2026
      %v2031 = vpack.c.b16 %v2029, %v2028
      %2034 = vst [vmem:[%s4] sm:$0xff] %v2030
      %2035 = vst [vmem:[%s4 + $0x8] sm:$0xff] %v2031
    $region29: #{energy_regressor_forward.3} parent=1 // pred_fallthru
      _
    // Predicated region
    $region30: #{energy_regressor_forward.3} parent=1 // pred_check
      _
    $region31: #{energy_regressor_forward.3} parent=1 // pred_check_branch
      %2037 = sbr.rel (0) target = $region33
    $region32: #{energy_regressor_forward.3} parent=1 // pred_region
      _
    $region33: #{energy_regressor_forward.3} parent=1 // pred_fallthru
      _
    // Predicated region
    $region34: #{energy_regressor_forward.3} parent=1 // pred_check
      _
    $region35: #{energy_regressor_forward.3} parent=1 // pred_check_branch
      %2039 = sbr.rel (0) target = $region37
    $region36: #{energy_regressor_forward.3} parent=1 // pred_region
      _
    $region37: #{energy_regressor_forward.3} parent=1 // pred_fallthru
      _
    %2040 = vsyncpa [#allocation4], 1

</llo_original>
